<compile_context>
chip_gen: v7x
topology: tpu7x:2x2x1
jax: 0.10.0
libtpu: 0.0.40
codegen_flags: <defaults>
</compile_context>

<pallas_src>
import functools

import numpy as np

import jax
import jax.numpy as jnp
from jax.experimental import pallas as pl
from jax.experimental.pallas import tpu as pltpu

BN_EPS = 1e-5


def _round_up(x, m):
    return (x + m - 1) // m * m


def _bn_relu_masked(acc, mask, inv_count, gamma, beta):
    """Training-mode BatchNorm2d + ReLU over the lane axis with a validity mask.

    acc   : (C, L) f32 pre-BN activations (garbage where mask == 0)
    mask  : (1, L) f32 {0,1} marking the N*Ho*Wo valid output positions
    inv_count : python float, 1 / (N*Ho*Wo)  (biased variance, as PyTorch)
    gamma, beta : (C, 1)
    Returns (C, L) f32 with exact zeros wherever mask == 0.
    """
    mean = jnp.sum(acc * mask, axis=1, keepdims=True) * inv_count
    cen = (acc - mean) * mask                      # centered, zeroed at invalid
    var = jnp.sum(cen * cen, axis=1, keepdims=True) * inv_count
    y = cen * jax.lax.rsqrt(var + BN_EPS) * gamma + beta
    return jnp.maximum(y, 0.0) * mask


def _unet2d_fused_kernel(x_ref, w1_ref, w2_ref, g1_ref, b1_ref, g2_ref,
                         b2_ref, m1_ref, m2_ref, o_ref, p_ref, h_ref,
                         *, offs1, offs2, cin1, cmid, len1, len2,
                         inv_cnt1, inv_cnt2):
    """Fused: ConvT+BN+ReLU (stage 1) -> ConvT+BN+ReLU (stage 2).

    x_ref : (cin1, len1 + max_shift1)  flattened zero-embedded input grid
    w1_ref: (cmid, K1*K1*cin1)         equivalent-conv weights, tap-major
    w2_ref: (cout, K2*K2*cmid)
    g*/b* : (C, 1) BN affine params
    m1/m2 : (1, len1) / (1, len2) validity masks
    o_ref : (cout, len2)
    p_ref : VMEM scratch, patch matrix (max rows, len1)
    h_ref : VMEM scratch, stage-1 output (cmid, len1)
    """
    # ---- stage 1: build patches via lane shifts, one wide-contraction matmul.
    for t, d in enumerate(offs1):
        p_ref[t * cin1:(t + 1) * cin1, :] = x_ref[:, d:d + len1]
    acc1 = jnp.dot(w1_ref[...], p_ref[0:len(offs1) * cin1, :],
                   preferred_element_type=jnp.float32)          # (cmid, len1)
    # Masked result == stage 2's zero-padded full-conv input, kept in VMEM.
    h_ref[...] = _bn_relu_masked(acc1, m1_ref[...], inv_cnt1,
                                 g1_ref[...], b1_ref[...])

    # ---- stage 2: same trick on the stage-1 output grid.
    for t, d in enumerate(offs2):
        p_ref[t * cmid:(t + 1) * cmid, 0:len2] = h_ref[:, d:d + len2]
    acc2 = jnp.dot(w2_ref[...], p_ref[0:len(offs2) * cmid, 0:len2],
                   preferred_element_type=jnp.float32)          # (cout, len2)
    o_ref[...] = _bn_relu_masked(acc2, m2_ref[...], inv_cnt2,
                                 g2_ref[...], b2_ref[...])


def _conv_equiv_weight(wt, cin_pad):
    """ConvTranspose2d weight (Cin, Cout, K, K) -> equivalent full-conv matrix
    (Cout, K*K*cin_pad): spatially flipped, in/out swapped, tap-major /
    cin-minor, with the cin axis zero-padded to cin_pad."""
    cin, cout, k, _ = wt.shape
    w = wt[:, :, ::-1, ::-1]                        # flip spatial taps
    w = jnp.transpose(w, (1, 2, 3, 0))              # (Cout, K, K, Cin)
    w = jnp.pad(w, ((0, 0), (0, 0), (0, 0), (0, cin_pad - cin)))
    return w.reshape(cout, k * k * cin_pad)


def unet2d_block(x, s, params):
    """Unet2dBlock.forward, fused into a single Pallas call.

    Conv biases are omitted on purpose: training-mode BN's mean subtraction
    cancels a per-channel bias exactly.
    """
    wt1, wt2 = params["wt1"], params["wt2"]
    n, _, h, w = x.shape
    cin1, cout1, k1, _ = wt1.shape
    _, cout2, k2, _ = wt2.shape
    assert x.shape[1] + s.shape[1] == cin1

    ho1, wo1 = h + k1 - 1, w + k1 - 1            # stage-1 output (18x18)
    ho2, wo2 = ho1 + k2 - 1, wo1 + k2 - 1        # stage-2 output (20x20)

    # Common per-image grid: big enough for stage-1's (K1-1)-padded input at
    # offset (K2-1, K2-1) and stage-2's (K2-1)-padded input at (0, 0).
    gh = h + (k1 - 1) + (k2 - 1) + max(k1, k2) - 1
    gw = w + (k1 - 1) + (k2 - 1) + max(k1, k2) - 1

    cin1_p = _round_up(cin1, 8)      # pad channel axes to the f32 sublane tile
    cmid_p = _round_up(cout1, 8)

    m = n * gh * gw                              # flat positions per stage-2
    d1 = (k1 - 1) * gw + (k1 - 1)                # largest tap shift, stage 1
    d2 = (k2 - 1) * gw + (k2 - 1)                # largest tap shift, stage 2
    len1 = m + d2                                # stage-1 activation width
    len_in = len1 + d1                           # flat input width

    # --- input: cat channels, channels-first, embed each image at (off, off).
    off = (k1 - 1) + (k2 - 1)
    xc = jnp.concatenate([x, s], axis=1)                       # (N, Cin, H, W)
    xg = jnp.transpose(xc, (1, 0, 2, 3)).astype(jnp.float32)   # (Cin, N, H, W)
    xg = jnp.pad(xg, ((0, cin1_p - cin1), (0, 0),
                      (off, gh - off - h), (off, gw - off - w)))
    x_flat = jnp.pad(xg.reshape(cin1_p, m), ((0, 0), (0, len_in - m)))

    # --- weights / BN params in lane-dense layouts.
    w1_mat = _conv_equiv_weight(wt1, cin1_p)                   # (cout1, K1²·cin1_p)
    w1_mat = jnp.pad(w1_mat, ((0, cmid_p - cout1), (0, 0)))    # pad out-channels
    w2_mat = _conv_equiv_weight(wt2, cmid_p)                   # (cout2, K2²·cmid_p)
    g1 = jnp.pad(params["g1"], (0, cmid_p - cout1),
                 constant_values=1.0).reshape(cmid_p, 1)
    b1 = jnp.pad(params["b1"], (0, cmid_p - cout1)).reshape(cmid_p, 1)
    g2 = params["g2"].reshape(cout2, 1)
    b2 = params["b2"].reshape(cout2, 1)

    # --- validity masks over the flat grid (trace-time constants).
    def flat_mask(r0, c0, rr, cc, width):
        mm = np.zeros((gh, gw), np.float32)
        mm[r0:r0 + rr, c0:c0 + cc] = 1.0
        buf = np.zeros((1, width), np.float32)
        buf[0, :m] = np.tile(mm.reshape(-1), n)
        return jnp.asarray(buf)

    mask1 = flat_mask(k2 - 1, k2 - 1, ho1, wo1, len1)
    mask2 = flat_mask(0, 0, ho2, wo2, m)

    offs1 = tuple(kh * gw + kw for kh in range(k1) for kw in range(k1))
    offs2 = tuple(kh * gw + kw for kh in range(k2) for kw in range(k2))
    patch_rows = max(k1 * k1 * cin1_p, k2 * k2 * cmid_p)

    kernel = functools.partial(
        _unet2d_fused_kernel,
        offs1=offs1, offs2=offs2, cin1=cin1_p, cmid=cmid_p,
        len1=len1, len2=m,
        inv_cnt1=1.0 / float(n * ho1 * wo1),
        inv_cnt2=1.0 / float(n * ho2 * wo2))

    vmem = pl.BlockSpec(memory_space=pltpu.MemorySpace.VMEM)
    y2 = pl.pallas_call(
        kernel,
        out_shape=jax.ShapeDtypeStruct((cout2, m), jnp.float32),
        in_specs=[vmem] * 9,
        out_specs=vmem,
        scratch_shapes=[pltpu.VMEM((patch_rows, len1), jnp.float32),  # patches
                        pltpu.VMEM((cmid_p, len1), jnp.float32)],     # stage-1 out
    )(x_flat, w1_mat, w2_mat, g1, b1, g2, b2, mask1, mask2)

    # Extract the valid Ho2 x Wo2 window per image; back to NCHW.
    out = y2.reshape(cout2, n, gh, gw)[:, :, :ho2, :wo2]
    return jnp.transpose(out, (1, 0, 2, 3))


def init_params(key, in_channels, skip_channels, out_channels,
                kernel, skip_kernel):
    """Deterministic synthetic parameters (PyTorch ConvTranspose2d layout).

    cb1/cb2 (conv biases) are kept for parameter parity with the PyTorch
    module but are unused: training-mode BN cancels them exactly.
    """
    k1, k2, k3, k4 = jax.random.split(key, 4)
    c1_in = in_channels + skip_channels
    params = {
        # layer 1: ConvTranspose2d(in+skip -> in, skip_kernel)
        "wt1": 0.1 * jax.random.normal(
            k1, (c1_in, in_channels, skip_kernel, skip_kernel), jnp.float32),
        "cb1": 0.1 * jax.random.normal(k2, (in_channels,), jnp.float32),
        "g1": jnp.ones((in_channels,), jnp.float32),
        "b1": jnp.zeros((in_channels,), jnp.float32),
        # layer 2: ConvTranspose2d(in -> out, kernel)
        "wt2": 0.1 * jax.random.normal(
            k3, (in_channels, out_channels, kernel, kernel), jnp.float32),
        "cb2": 0.1 * jax.random.normal(k4, (out_channels,), jnp.float32),
        "g2": jnp.ones((out_channels,), jnp.float32),
        "b2": jnp.zeros((out_channels,), jnp.float32),
    }
    return params


if __name__ == "__main__":
    in_channels, skip_channels, out_channels = 4, 4, 8
    kernel, skip_kernel = 3, 3
    N, H, W = 2, 16, 16

    root = jax.random.PRNGKey(0)
    kx, ks, kp = jax.random.split(root, 3)
    x = jax.random.normal(kx, (N, in_channels, H, W), jnp.float32)
    s = jax.random.normal(ks, (N, skip_channels, H, W), jnp.float32)
    params = init_params(kp, in_channels, skip_channels, out_channels,
                         kernel, skip_kernel)

    out = jax.jit(unet2d_block)(x, s, params)
    out = jax.block_until_ready(out)

    expected_shape = (N, out_channels, H + skip_kernel - 1 + kernel - 1,
                      W + skip_kernel - 1 + kernel - 1)
    assert out.shape == expected_shape, (out.shape, expected_shape)
    assert bool(jnp.all(jnp.isfinite(out)))
    assert bool(jnp.all(out >= 0.0))  # ReLU output
    print("KERNEL_OK")
</pallas_src>

<mosaic_0001>
module attributes {stable_mosaic.version = 11 : i64} {
  func.func @_unet2d_fused_kernel(%arg0: memref<8x1060xf32, #tpu.memory_space<vmem>>, %arg1: memref<8x72xf32, #tpu.memory_space<vmem>>, %arg2: memref<8x72xf32, #tpu.memory_space<vmem>>, %arg3: memref<8x1xf32, #tpu.memory_space<vmem>>, %arg4: memref<8x1xf32, #tpu.memory_space<vmem>>, %arg5: memref<8x1xf32, #tpu.memory_space<vmem>>, %arg6: memref<8x1xf32, #tpu.memory_space<vmem>>, %arg7: memref<1x1014xf32, #tpu.memory_space<vmem>>, %arg8: memref<1x968xf32, #tpu.memory_space<vmem>>, %arg9: memref<8x968xf32, #tpu.memory_space<vmem>>, %arg10: memref<72x1014xf32, #tpu.memory_space<vmem>>, %arg11: memref<8x1014xf32, #tpu.memory_space<vmem>>) attributes {dimension_semantics = [], scalar_prefetch = 0 : i64, scratch_operands = 2 : i64, tpu.core_type = #tpu.core_type<tc>} {
    %c0 = arith.constant 0 : index
    %c0_0 = arith.constant 0 : index
    %0 = vector.load %arg0[%c0, %c0_0] : memref<8x1060xf32, #tpu.memory_space<vmem>>, vector<8x1014xf32>
    %c0_1 = arith.constant 0 : index
    %c0_2 = arith.constant 0 : index
    %1 = vector.load %arg10[%c0_1, %c0_2] : memref<72x1014xf32, #tpu.memory_space<vmem>>, vector<8x1014xf32>
    tpu.vector_store %arg10[%c0_1, %c0_2], %0 {strides = array<i32>} : memref<72x1014xf32, #tpu.memory_space<vmem>>, vector<8x1014xf32>,
    %c0_3 = arith.constant 0 : index
    %c1 = arith.constant 1 : index
    %2 = vector.load %arg0[%c0_3, %c1] : memref<8x1060xf32, #tpu.memory_space<vmem>>, vector<8x1014xf32>
    %c8 = arith.constant 8 : index
    %c0_4 = arith.constant 0 : index
    %3 = vector.load %arg10[%c8, %c0_4] : memref<72x1014xf32, #tpu.memory_space<vmem>>, vector<8x1014xf32>
    tpu.vector_store %arg10[%c8, %c0_4], %2 {strides = array<i32>} : memref<72x1014xf32, #tpu.memory_space<vmem>>, vector<8x1014xf32>,
    %c0_5 = arith.constant 0 : index
    %c2 = arith.constant 2 : index
    %4 = vector.load %arg0[%c0_5, %c2] : memref<8x1060xf32, #tpu.memory_space<vmem>>, vector<8x1014xf32>
    %c16 = arith.constant 16 : index
    %c0_6 = arith.constant 0 : index
    %5 = vector.load %arg10[%c16, %c0_6] : memref<72x1014xf32, #tpu.memory_space<vmem>>, vector<8x1014xf32>
    tpu.vector_store %arg10[%c16, %c0_6], %4 {strides = array<i32>} : memref<72x1014xf32, #tpu.memory_space<vmem>>, vector<8x1014xf32>,
    %c0_7 = arith.constant 0 : index
    %c22 = arith.constant 22 : index
    %6 = vector.load %arg0[%c0_7, %c22] : memref<8x1060xf32, #tpu.memory_space<vmem>>, vector<8x1014xf32>
    %c24 = arith.constant 24 : index
    %c0_8 = arith.constant 0 : index
    %7 = vector.load %arg10[%c24, %c0_8] : memref<72x1014xf32, #tpu.memory_space<vmem>>, vector<8x1014xf32>
    tpu.vector_store %arg10[%c24, %c0_8], %6 {strides = array<i32>} : memref<72x1014xf32, #tpu.memory_space<vmem>>, vector<8x1014xf32>,
    %c0_9 = arith.constant 0 : index
    %c23 = arith.constant 23 : index
    %8 = vector.load %arg0[%c0_9, %c23] : memref<8x1060xf32, #tpu.memory_space<vmem>>, vector<8x1014xf32>
    %c32 = arith.constant 32 : index
    %c0_10 = arith.constant 0 : index
    %9 = vector.load %arg10[%c32, %c0_10] : memref<72x1014xf32, #tpu.memory_space<vmem>>, vector<8x1014xf32>
    tpu.vector_store %arg10[%c32, %c0_10], %8 {strides = array<i32>} : memref<72x1014xf32, #tpu.memory_space<vmem>>, vector<8x1014xf32>,
    %c0_11 = arith.constant 0 : index
    %c24_12 = arith.constant 24 : index
    %10 = vector.load %arg0[%c0_11, %c24_12] : memref<8x1060xf32, #tpu.memory_space<vmem>>, vector<8x1014xf32>
    %c40 = arith.constant 40 : index
    %c0_13 = arith.constant 0 : index
    %11 = vector.load %arg10[%c40, %c0_13] : memref<72x1014xf32, #tpu.memory_space<vmem>>, vector<8x1014xf32>
    tpu.vector_store %arg10[%c40, %c0_13], %10 {strides = array<i32>} : memref<72x1014xf32, #tpu.memory_space<vmem>>, vector<8x1014xf32>,
    %c0_14 = arith.constant 0 : index
    %c44 = arith.constant 44 : index
    %12 = vector.load %arg0[%c0_14, %c44] : memref<8x1060xf32, #tpu.memory_space<vmem>>, vector<8x1014xf32>
    %c48 = arith.constant 48 : index
    %c0_15 = arith.constant 0 : index
    %13 = vector.load %arg10[%c48, %c0_15] : memref<72x1014xf32, #tpu.memory_space<vmem>>, vector<8x1014xf32>
    tpu.vector_store %arg10[%c48, %c0_15], %12 {strides = array<i32>} : memref<72x1014xf32, #tpu.memory_space<vmem>>, vector<8x1014xf32>,
    %c0_16 = arith.constant 0 : index
    %c45 = arith.constant 45 : index
    %14 = vector.load %arg0[%c0_16, %c45] : memref<8x1060xf32, #tpu.memory_space<vmem>>, vector<8x1014xf32>
    %c56 = arith.constant 56 : index
    %c0_17 = arith.constant 0 : index
    %15 = vector.load %arg10[%c56, %c0_17] : memref<72x1014xf32, #tpu.memory_space<vmem>>, vector<8x1014xf32>
    tpu.vector_store %arg10[%c56, %c0_17], %14 {strides = array<i32>} : memref<72x1014xf32, #tpu.memory_space<vmem>>, vector<8x1014xf32>,
    %c0_18 = arith.constant 0 : index
    %c46 = arith.constant 46 : index
    %16 = vector.load %arg0[%c0_18, %c46] : memref<8x1060xf32, #tpu.memory_space<vmem>>, vector<8x1014xf32>
    %c64 = arith.constant 64 : index
    %c0_19 = arith.constant 0 : index
    %17 = vector.load %arg10[%c64, %c0_19] : memref<72x1014xf32, #tpu.memory_space<vmem>>, vector<8x1014xf32>
    tpu.vector_store %arg10[%c64, %c0_19], %16 {strides = array<i32>} : memref<72x1014xf32, #tpu.memory_space<vmem>>, vector<8x1014xf32>,
    %c0_20 = arith.constant 0 : index
    %c0_21 = arith.constant 0 : index
    %18 = vector.load %arg1[%c0_20, %c0_21] : memref<8x72xf32, #tpu.memory_space<vmem>>, vector<8x72xf32>
    %c0_22 = arith.constant 0 : index
    %c0_23 = arith.constant 0 : index
    %19 = vector.load %arg10[%c0_22, %c0_23] : memref<72x1014xf32, #tpu.memory_space<vmem>>, vector<72x1014xf32>
    %cst = arith.constant dense<0.000000e+00> : vector<8x1014xf32>
    %20 = tpu.matmul %18, %19, %cst {dimension_numbers = #tpu.dot_dimension_numbers<[1], [0], [0], [1], [0, 0, 1, 1], [], []>} : vector<8x72xf32>, vector<72x1014xf32>, vector<8x1014xf32> -> vector<8x1014xf32>
    %c0_24 = arith.constant 0 : index
    %c0_25 = arith.constant 0 : index
    %21 = vector.load %arg7[%c0_24, %c0_25] : memref<1x1014xf32, #tpu.memory_space<vmem>>, vector<1x1014xf32>
    %c0_26 = arith.constant 0 : index
    %c0_27 = arith.constant 0 : index
    %22 = vector.load %arg3[%c0_26, %c0_27] : memref<8x1xf32, #tpu.memory_space<vmem>>, vector<8x1xf32>
    %c0_28 = arith.constant 0 : index
    %c0_29 = arith.constant 0 : index
    %23 = vector.load %arg4[%c0_28, %c0_29] : memref<8x1xf32, #tpu.memory_space<vmem>>, vector<8x1xf32>
    %24 = vector.broadcast %21 : vector<1x1014xf32> to vector<8x1014xf32>
    %25 = arith.mulf %20, %24 : vector<8x1014xf32>
    %cst_30 = arith.constant dense<0.000000e+00> : vector<8xf32>
    %26 = vector.multi_reduction <add>, %25, %cst_30 [1] : vector<8x1014xf32> to vector<8xf32>
    %27 = vector.shape_cast %26 : vector<8xf32> to vector<8x1xf32>
    %cst_31 = arith.constant 0.00154320989 : f32
    %28 = vector.broadcast %cst_31 : f32 to vector<8x1xf32>
    %29 = arith.mulf %27, %28 : vector<8x1xf32>
    %30 = vector.broadcast %29 : vector<8x1xf32> to vector<8x1014xf32>
    %31 = arith.subf %20, %30 : vector<8x1014xf32>
    %32 = vector.broadcast %21 : vector<1x1014xf32> to vector<8x1014xf32>
    %33 = arith.mulf %31, %32 : vector<8x1014xf32>
    %34 = arith.mulf %33, %33 : vector<8x1014xf32>
    %cst_32 = arith.constant dense<0.000000e+00> : vector<8xf32>
    %35 = vector.multi_reduction <add>, %34, %cst_32 [1] : vector<8x1014xf32> to vector<8xf32>
    %36 = vector.shape_cast %35 : vector<8xf32> to vector<8x1xf32>
    %cst_33 = arith.constant 0.00154320989 : f32
    %37 = vector.broadcast %cst_33 : f32 to vector<8x1xf32>
    %38 = arith.mulf %36, %37 : vector<8x1xf32>
    %cst_34 = arith.constant 9.99999974E-6 : f32
    %39 = vector.broadcast %cst_34 : f32 to vector<8x1xf32>
    %40 = arith.addf %38, %39 : vector<8x1xf32>
    %41 = math.rsqrt %40 : vector<8x1xf32>
    %42 = vector.broadcast %41 : vector<8x1xf32> to vector<8x1014xf32>
    %43 = arith.mulf %33, %42 : vector<8x1014xf32>
    %44 = vector.broadcast %22 : vector<8x1xf32> to vector<8x1014xf32>
    %45 = arith.mulf %43, %44 : vector<8x1014xf32>
    %46 = vector.broadcast %23 : vector<8x1xf32> to vector<8x1014xf32>
    %47 = arith.addf %45, %46 : vector<8x1014xf32>
    %cst_35 = arith.constant 0.000000e+00 : f32
    %48 = vector.broadcast %cst_35 : f32 to vector<8x1014xf32>
    %49 = arith.maximumf %47, %48 : vector<8x1014xf32>
    %50 = vector.broadcast %21 : vector<1x1014xf32> to vector<8x1014xf32>
    %51 = arith.mulf %49, %50 : vector<8x1014xf32>
    %c0_36 = arith.constant 0 : index
    %c0_37 = arith.constant 0 : index
    %52 = vector.load %arg11[%c0_36, %c0_37] : memref<8x1014xf32, #tpu.memory_space<vmem>>, vector<8x1014xf32>
    tpu.vector_store %arg11[%c0_36, %c0_37], %51 {strides = array<i32>} : memref<8x1014xf32, #tpu.memory_space<vmem>>, vector<8x1014xf32>,
    %c0_38 = arith.constant 0 : index
    %c0_39 = arith.constant 0 : index
    %53 = vector.load %arg11[%c0_38, %c0_39] : memref<8x1014xf32, #tpu.memory_space<vmem>>, vector<8x968xf32>
    %c0_40 = arith.constant 0 : index
    %c0_41 = arith.constant 0 : index
    %54 = vector.load %arg10[%c0_40, %c0_41] : memref<72x1014xf32, #tpu.memory_space<vmem>>, vector<8x968xf32>
    tpu.vector_store %arg10[%c0_40, %c0_41], %53 {strides = array<i32>} : memref<72x1014xf32, #tpu.memory_space<vmem>>, vector<8x968xf32>,
    %c0_42 = arith.constant 0 : index
    %c1_43 = arith.constant 1 : index
    %55 = vector.load %arg11[%c0_42, %c1_43] : memref<8x1014xf32, #tpu.memory_space<vmem>>, vector<8x968xf32>
    %c8_44 = arith.constant 8 : index
    %c0_45 = arith.constant 0 : index
    %56 = vector.load %arg10[%c8_44, %c0_45] : memref<72x1014xf32, #tpu.memory_space<vmem>>, vector<8x968xf32>
    tpu.vector_store %arg10[%c8_44, %c0_45], %55 {strides = array<i32>} : memref<72x1014xf32, #tpu.memory_space<vmem>>, vector<8x968xf32>,
    %c0_46 = arith.constant 0 : index
    %c2_47 = arith.constant 2 : index
    %57 = vector.load %arg11[%c0_46, %c2_47] : memref<8x1014xf32, #tpu.memory_space<vmem>>, vector<8x968xf32>
    %c16_48 = arith.constant 16 : index
    %c0_49 = arith.constant 0 : index
    %58 = vector.load %arg10[%c16_48, %c0_49] : memref<72x1014xf32, #tpu.memory_space<vmem>>, vector<8x968xf32>
    tpu.vector_store %arg10[%c16_48, %c0_49], %57 {strides = array<i32>} : memref<72x1014xf32, #tpu.memory_space<vmem>>, vector<8x968xf32>,
    %c0_50 = arith.constant 0 : index
    %c22_51 = arith.constant 22 : index
    %59 = vector.load %arg11[%c0_50, %c22_51] : memref<8x1014xf32, #tpu.memory_space<vmem>>, vector<8x968xf32>
    %c24_52 = arith.constant 24 : index
    %c0_53 = arith.constant 0 : index
    %60 = vector.load %arg10[%c24_52, %c0_53] : memref<72x1014xf32, #tpu.memory_space<vmem>>, vector<8x968xf32>
    tpu.vector_store %arg10[%c24_52, %c0_53], %59 {strides = array<i32>} : memref<72x1014xf32, #tpu.memory_space<vmem>>, vector<8x968xf32>,
    %c0_54 = arith.constant 0 : index
    %c23_55 = arith.constant 23 : index
    %61 = vector.load %arg11[%c0_54, %c23_55] : memref<8x1014xf32, #tpu.memory_space<vmem>>, vector<8x968xf32>
    %c32_56 = arith.constant 32 : index
    %c0_57 = arith.constant 0 : index
    %62 = vector.load %arg10[%c32_56, %c0_57] : memref<72x1014xf32, #tpu.memory_space<vmem>>, vector<8x968xf32>
    tpu.vector_store %arg10[%c32_56, %c0_57], %61 {strides = array<i32>} : memref<72x1014xf32, #tpu.memory_space<vmem>>, vector<8x968xf32>,
    %c0_58 = arith.constant 0 : index
    %c24_59 = arith.constant 24 : index
    %63 = vector.load %arg11[%c0_58, %c24_59] : memref<8x1014xf32, #tpu.memory_space<vmem>>, vector<8x968xf32>
    %c40_60 = arith.constant 40 : index
    %c0_61 = arith.constant 0 : index
    %64 = vector.load %arg10[%c40_60, %c0_61] : memref<72x1014xf32, #tpu.memory_space<vmem>>, vector<8x968xf32>
    tpu.vector_store %arg10[%c40_60, %c0_61], %63 {strides = array<i32>} : memref<72x1014xf32, #tpu.memory_space<vmem>>, vector<8x968xf32>,
    %c0_62 = arith.constant 0 : index
    %c44_63 = arith.constant 44 : index
    %65 = vector.load %arg11[%c0_62, %c44_63] : memref<8x1014xf32, #tpu.memory_space<vmem>>, vector<8x968xf32>
    %c48_64 = arith.constant 48 : index
    %c0_65 = arith.constant 0 : index
    %66 = vector.load %arg10[%c48_64, %c0_65] : memref<72x1014xf32, #tpu.memory_space<vmem>>, vector<8x968xf32>
    tpu.vector_store %arg10[%c48_64, %c0_65], %65 {strides = array<i32>} : memref<72x1014xf32, #tpu.memory_space<vmem>>, vector<8x968xf32>,
    %c0_66 = arith.constant 0 : index
    %c45_67 = arith.constant 45 : index
    %67 = vector.load %arg11[%c0_66, %c45_67] : memref<8x1014xf32, #tpu.memory_space<vmem>>, vector<8x968xf32>
    %c56_68 = arith.constant 56 : index
    %c0_69 = arith.constant 0 : index
    %68 = vector.load %arg10[%c56_68, %c0_69] : memref<72x1014xf32, #tpu.memory_space<vmem>>, vector<8x968xf32>
    tpu.vector_store %arg10[%c56_68, %c0_69], %67 {strides = array<i32>} : memref<72x1014xf32, #tpu.memory_space<vmem>>, vector<8x968xf32>,
    %c0_70 = arith.constant 0 : index
    %c46_71 = arith.constant 46 : index
    %69 = vector.load %arg11[%c0_70, %c46_71] : memref<8x1014xf32, #tpu.memory_space<vmem>>, vector<8x968xf32>
    %c64_72 = arith.constant 64 : index
    %c0_73 = arith.constant 0 : index
    %70 = vector.load %arg10[%c64_72, %c0_73] : memref<72x1014xf32, #tpu.memory_space<vmem>>, vector<8x968xf32>
    tpu.vector_store %arg10[%c64_72, %c0_73], %69 {strides = array<i32>} : memref<72x1014xf32, #tpu.memory_space<vmem>>, vector<8x968xf32>,
    %c0_74 = arith.constant 0 : index
    %c0_75 = arith.constant 0 : index
    %71 = vector.load %arg2[%c0_74, %c0_75] : memref<8x72xf32, #tpu.memory_space<vmem>>, vector<8x72xf32>
    %c0_76 = arith.constant 0 : index
    %c0_77 = arith.constant 0 : index
    %72 = vector.load %arg10[%c0_76, %c0_77] : memref<72x1014xf32, #tpu.memory_space<vmem>>, vector<72x968xf32>
    %cst_78 = arith.constant dense<0.000000e+00> : vector<8x968xf32>
    %73 = tpu.matmul %71, %72, %cst_78 {dimension_numbers = #tpu.dot_dimension_numbers<[1], [0], [0], [1], [0, 0, 1, 1], [], []>} : vector<8x72xf32>, vector<72x968xf32>, vector<8x968xf32> -> vector<8x968xf32>
    %c0_79 = arith.constant 0 : index
    %c0_80 = arith.constant 0 : index
    %74 = vector.load %arg8[%c0_79, %c0_80] : memref<1x968xf32, #tpu.memory_space<vmem>>, vector<1x968xf32>
    %c0_81 = arith.constant 0 : index
    %c0_82 = arith.constant 0 : index
    %75 = vector.load %arg5[%c0_81, %c0_82] : memref<8x1xf32, #tpu.memory_space<vmem>>, vector<8x1xf32>
    %c0_83 = arith.constant 0 : index
    %c0_84 = arith.constant 0 : index
    %76 = vector.load %arg6[%c0_83, %c0_84] : memref<8x1xf32, #tpu.memory_space<vmem>>, vector<8x1xf32>
    %77 = vector.broadcast %74 : vector<1x968xf32> to vector<8x968xf32>
    %78 = arith.mulf %73, %77 : vector<8x968xf32>
    %cst_85 = arith.constant dense<0.000000e+00> : vector<8xf32>
    %79 = vector.multi_reduction <add>, %78, %cst_85 [1] : vector<8x968xf32> to vector<8xf32>
    %80 = vector.shape_cast %79 : vector<8xf32> to vector<8x1xf32>
    %cst_86 = arith.constant 1.250000e-03 : f32
    %81 = vector.broadcast %cst_86 : f32 to vector<8x1xf32>
    %82 = arith.mulf %80, %81 : vector<8x1xf32>
    %83 = vector.broadcast %82 : vector<8x1xf32> to vector<8x968xf32>
    %84 = arith.subf %73, %83 : vector<8x968xf32>
    %85 = vector.broadcast %74 : vector<1x968xf32> to vector<8x968xf32>
    %86 = arith.mulf %84, %85 : vector<8x968xf32>
    %87 = arith.mulf %86, %86 : vector<8x968xf32>
    %cst_87 = arith.constant dense<0.000000e+00> : vector<8xf32>
    %88 = vector.multi_reduction <add>, %87, %cst_87 [1] : vector<8x968xf32> to vector<8xf32>
    %89 = vector.shape_cast %88 : vector<8xf32> to vector<8x1xf32>
    %cst_88 = arith.constant 1.250000e-03 : f32
    %90 = vector.broadcast %cst_88 : f32 to vector<8x1xf32>
    %91 = arith.mulf %89, %90 : vector<8x1xf32>
    %cst_89 = arith.constant 9.99999974E-6 : f32
    %92 = vector.broadcast %cst_89 : f32 to vector<8x1xf32>
    %93 = arith.addf %91, %92 : vector<8x1xf32>
    %94 = math.rsqrt %93 : vector<8x1xf32>
    %95 = vector.broadcast %94 : vector<8x1xf32> to vector<8x968xf32>
    %96 = arith.mulf %86, %95 : vector<8x968xf32>
    %97 = vector.broadcast %75 : vector<8x1xf32> to vector<8x968xf32>
    %98 = arith.mulf %96, %97 : vector<8x968xf32>
    %99 = vector.broadcast %76 : vector<8x1xf32> to vector<8x968xf32>
    %100 = arith.addf %98, %99 : vector<8x968xf32>
    %cst_90 = arith.constant 0.000000e+00 : f32
    %101 = vector.broadcast %cst_90 : f32 to vector<8x968xf32>
    %102 = arith.maximumf %100, %101 : vector<8x968xf32>
    %103 = vector.broadcast %74 : vector<1x968xf32> to vector<8x968xf32>
    %104 = arith.mulf %102, %103 : vector<8x968xf32>
    %c0_91 = arith.constant 0 : index
    %c0_92 = arith.constant 0 : index
    %105 = vector.load %arg9[%c0_91, %c0_92] : memref<8x968xf32, #tpu.memory_space<vmem>>, vector<8x968xf32>
    tpu.vector_store %arg9[%c0_91, %c0_92], %104 {strides = array<i32>} : memref<8x968xf32, #tpu.memory_space<vmem>>, vector<8x968xf32>,
    return
  }
}

</mosaic_0001>

<llo_original>
// kernel: unet2d_block.1
$region0: #{unet2d_block.1}
  #allocation0 [shape = 'u32[]', space=smem, size = 0x4, offset = 0x4, fixed_abs, tag = 'smem constant byte address 0x4 - core index']
  #allocation1 [shape = 'u32[144,128]{1,0:T(1,128)}', space=vmem, size = 0x12000, scoped, tag = 'internal scratch']
  #allocation2 [shape = 'f32[72,1014]{1,0:T(8,128)}', space=vmem, size = 0x48000, scoped, tag = 'scratch operand']
  #allocation3 [shape = 'f32[8,1014]{1,0:T(8,128)}', space=vmem, size = 0x8000, scoped, tag = 'scratch operand']
  %s0 = inlined_call_operand.vmem [shape: f32[8,1060], index: 0, kind: input, shape index: {}]
  %s1 = inlined_call_operand.vmem [shape: f32[8,72], index: 1, kind: input, shape index: {}]
  %s2 = inlined_call_operand.vmem [shape: f32[8,72], index: 2, kind: input, shape index: {}]
  %s3 = inlined_call_operand.vmem [shape: f32[8,1], index: 3, kind: input, shape index: {}]
  %s4 = inlined_call_operand.vmem [shape: f32[8,1], index: 4, kind: input, shape index: {}]
  %s5 = inlined_call_operand.vmem [shape: f32[8,1], index: 5, kind: input, shape index: {}]
  %s6 = inlined_call_operand.vmem [shape: f32[8,1], index: 6, kind: input, shape index: {}]
  %s7 = inlined_call_operand.vmem [shape: f32[1,1014], index: 7, kind: input, shape index: {}]
  %s8 = inlined_call_operand.vmem [shape: f32[1,968], index: 8, kind: input, shape index: {}]
  %s9 = inlined_call_operand.vmem [shape: f32[8,968], index: 9, kind: output, shape index: {}]
  %s10 = sld [smem:[#allocation0]]
  $region46: #{unet2d_block.1} parent=0
    _
  %s12 = ssub.s32 1, %s10
  %s13 = scalar_select 0, %s12, %s10
  // Predicated region
  $region2: #{unet2d_block.1} parent=0 // pred_check
    _
  $region3: #{unet2d_block.1} parent=0 // pred_check_branch
    %15 = sbr.rel (0) target = $region5
  $region4: #{unet2d_block.1} parent=0 // pred_region
    _
  $region5: #{unet2d_block.1} parent=0 // pred_fallthru
    _
  // Predicated region
  $region6: #{unet2d_block.1} parent=0 // pred_check
    _
  $region7: #{unet2d_block.1} parent=0 // pred_check_branch
    %17 = sbr.rel (0) target = $region9
  $region8: #{unet2d_block.1} parent=0 // pred_region
    _
  $region9: #{unet2d_block.1} parent=0 // pred_fallthru
    _
  // Predicated region
  $region10: #{unet2d_block.1} parent=0 // pred_check
    _
  $region11: #{unet2d_block.1} parent=0 // pred_check_branch
    %19 = sbr.rel (0) target = $region13
  $region12: #{unet2d_block.1} parent=0 // pred_region
    _
  $region13: #{unet2d_block.1} parent=0 // pred_fallthru
    _
  // Predicated region
  $region14: #{unet2d_block.1} parent=0 // pred_check
    _
  $region15: #{unet2d_block.1} parent=0 // pred_check_branch
    %21 = sbr.rel (0) target = $region17
  $region16: #{unet2d_block.1} parent=0 // pred_region
    _
  $region17: #{unet2d_block.1} parent=0 // pred_fallthru
    _
  // Predicated region
  $region18: #{unet2d_block.1} parent=0 // pred_check
    _
  $region19: #{unet2d_block.1} parent=0 // pred_check_branch
    %23 = sbr.rel (0) target = $region21
  $region20: #{unet2d_block.1} parent=0 // pred_region
    _
  $region21: #{unet2d_block.1} parent=0 // pred_fallthru
    _
  // Predicated region
  $region22: #{unet2d_block.1} parent=0 // pred_check
    _
  $region23: #{unet2d_block.1} parent=0 // pred_check_branch
    %25 = sbr.rel (0) target = $region25
  $region24: #{unet2d_block.1} parent=0 // pred_region
    _
  $region25: #{unet2d_block.1} parent=0 // pred_fallthru
    _
  // Predicated region
  $region26: #{unet2d_block.1} parent=0 // pred_check
    _
  $region27: #{unet2d_block.1} parent=0 // pred_check_branch
    %27 = sbr.rel (0) target = $region29
  $region28: #{unet2d_block.1} parent=0 // pred_region
    _
  $region29: #{unet2d_block.1} parent=0 // pred_fallthru
    _
  // Predicated region
  $region30: #{unet2d_block.1} parent=0 // pred_check
    _
  $region31: #{unet2d_block.1} parent=0 // pred_check_branch
    %29 = sbr.rel (0) target = $region33
  $region32: #{unet2d_block.1} parent=0 // pred_region
    _
  $region33: #{unet2d_block.1} parent=0 // pred_fallthru
    _
  // Predicated region
  $region34: #{unet2d_block.1} parent=0 // pred_check
    _
  $region35: #{unet2d_block.1} parent=0 // pred_check_branch
    %31 = sbr.rel (0) target = $region37
  $region36: #{unet2d_block.1} parent=0 // pred_region
    _
  $region37: #{unet2d_block.1} parent=0 // pred_fallthru
    _
  %v32 = vld [vmem:[%s0] sm:$0xff]
  %v33 = vld [vmem:[%s0 + $0x8] sm:$0xff]
  %v34 = vld [vmem:[%s0 + $0x10] sm:$0xff]
  %v35 = vld [vmem:[%s0 + $0x18] sm:$0xff]
  %v36 = vld [vmem:[%s0 + $0x20] sm:$0xff]
  %v37 = vld [vmem:[%s0 + $0x28] sm:$0xff]
  %v38 = vld [vmem:[%s0 + $0x30] sm:$0xff]
  %v39 = vld [vmem:[%s0 + $0x38] sm:$0xff]
  %40 = vst [vmem:[#allocation2] sm:$0xff] %v32
  %41 = vst [vmem:[#allocation2 + $0x8] sm:$0xff] %v33
  %42 = vst [vmem:[#allocation2 + $0x10] sm:$0xff] %v34
  %43 = vst [vmem:[#allocation2 + $0x18] sm:$0xff] %v35
  %44 = vst [vmem:[#allocation2 + $0x20] sm:$0xff] %v36
  %45 = vst [vmem:[#allocation2 + $0x28] sm:$0xff] %v37
  %46 = vst [vmem:[#allocation2 + $0x30] sm:$0xff] %v38
  %vm47 = vcmask 965632
  %48 = vst.msk [vmem:[#allocation2 + $0x38] sm:$0xff] %vm47, %v39
  %v49 = vld [vmem:[%s0] sm:$0xff]
  %v50 = vld [vmem:[%s0 + $0x8] sm:$0xff]
  %v51 = vld [vmem:[%s0 + $0x10] sm:$0xff]
  %v52 = vld [vmem:[%s0 + $0x18] sm:$0xff]
  %v53 = vld [vmem:[%s0 + $0x20] sm:$0xff]
  %v54 = vld [vmem:[%s0 + $0x28] sm:$0xff]
  %v55 = vld [vmem:[%s0 + $0x30] sm:$0xff]
  %v56 = vld [vmem:[%s0 + $0x38] sm:$0xff]
  %65 = vrot.lane.b32.xlu0 %v49, 127
  %v66 = vpop.permute.xlu0 %65
  %67 = vrot.lane.b32.xlu0 %v50, 127
  %v68 = vpop.permute.xlu0 %67
  %69 = vrot.lane.b32.xlu0 %v51, 127
  %v70 = vpop.permute.xlu0 %69
  %71 = vrot.lane.b32.xlu0 %v52, 127
  %v72 = vpop.permute.xlu0 %71
  %73 = vrot.lane.b32.xlu0 %v53, 127
  %v74 = vpop.permute.xlu0 %73
  %75 = vrot.lane.b32.xlu0 %v54, 127
  %v76 = vpop.permute.xlu0 %75
  %77 = vrot.lane.b32.xlu0 %v55, 127
  %v78 = vpop.permute.xlu0 %77
  %79 = vrot.lane.b32.xlu0 %v56, 127
  %v80 = vpop.permute.xlu0 %79
  %vm81 = vcmask 1039360
  %v82 = vsel %vm81, %v66, %v68
  %v83 = vsel %vm81, %v68, %v70
  %v84 = vsel %vm81, %v70, %v72
  %v85 = vsel %vm81, %v72, %v74
  %v86 = vsel %vm81, %v74, %v76
  %v87 = vsel %vm81, %v76, %v78
  %v88 = vsel %vm81, %v78, %v80
  %97 = vst [vmem:[#allocation2 + $0x40] sm:$0xff] %v82
  %98 = vst [vmem:[#allocation2 + $0x48] sm:$0xff] %v83
  %99 = vst [vmem:[#allocation2 + $0x50] sm:$0xff] %v84
  %100 = vst [vmem:[#allocation2 + $0x58] sm:$0xff] %v85
  %101 = vst [vmem:[#allocation2 + $0x60] sm:$0xff] %v86
  %102 = vst [vmem:[#allocation2 + $0x68] sm:$0xff] %v87
  %103 = vst [vmem:[#allocation2 + $0x70] sm:$0xff] %v88
  %104 = vst.msk [vmem:[#allocation2 + $0x78] sm:$0xff] %vm47, %v80
  %v105 = vld [vmem:[%s0] sm:$0xff]
  %v106 = vld [vmem:[%s0 + $0x8] sm:$0xff]
  %v107 = vld [vmem:[%s0 + $0x10] sm:$0xff]
  %v108 = vld [vmem:[%s0 + $0x18] sm:$0xff]
  %v109 = vld [vmem:[%s0 + $0x20] sm:$0xff]
  %v110 = vld [vmem:[%s0 + $0x28] sm:$0xff]
  %v111 = vld [vmem:[%s0 + $0x30] sm:$0xff]
  %v112 = vld [vmem:[%s0 + $0x38] sm:$0xff]
  %121 = vrot.lane.b32.xlu0 %v105, 126
  %v122 = vpop.permute.xlu0 %121
  %123 = vrot.lane.b32.xlu0 %v106, 126
  %v124 = vpop.permute.xlu0 %123
  %125 = vrot.lane.b32.xlu0 %v107, 126
  %v126 = vpop.permute.xlu0 %125
  %127 = vrot.lane.b32.xlu0 %v108, 126
  %v128 = vpop.permute.xlu0 %127
  %129 = vrot.lane.b32.xlu0 %v109, 126
  %v130 = vpop.permute.xlu0 %129
  %131 = vrot.lane.b32.xlu0 %v110, 126
  %v132 = vpop.permute.xlu0 %131
  %133 = vrot.lane.b32.xlu0 %v111, 126
  %v134 = vpop.permute.xlu0 %133
  %135 = vrot.lane.b32.xlu0 %v112, 126
  %v136 = vpop.permute.xlu0 %135
  %vm137 = vcmask 1031168
  %v138 = vsel %vm137, %v122, %v124
  %v139 = vsel %vm137, %v124, %v126
  %v140 = vsel %vm137, %v126, %v128
  %v141 = vsel %vm137, %v128, %v130
  %v142 = vsel %vm137, %v130, %v132
  %v143 = vsel %vm137, %v132, %v134
  %v144 = vsel %vm137, %v134, %v136
  %153 = vst [vmem:[#allocation2 + $0x80] sm:$0xff] %v138
  %154 = vst [vmem:[#allocation2 + $0x88] sm:$0xff] %v139
  %155 = vst [vmem:[#allocation2 + $0x90] sm:$0xff] %v140
  %156 = vst [vmem:[#allocation2 + $0x98] sm:$0xff] %v141
  %157 = vst [vmem:[#allocation2 + $0xa0] sm:$0xff] %v142
  %158 = vst [vmem:[#allocation2 + $0xa8] sm:$0xff] %v143
  %159 = vst [vmem:[#allocation2 + $0xb0] sm:$0xff] %v144
  %160 = vst.msk [vmem:[#allocation2 + $0xb8] sm:$0xff] %vm47, %v136
  %v161 = vld [vmem:[%s0] sm:$0xff]
  %v162 = vld [vmem:[%s0 + $0x8] sm:$0xff]
  %v163 = vld [vmem:[%s0 + $0x10] sm:$0xff]
  %v164 = vld [vmem:[%s0 + $0x18] sm:$0xff]
  %v165 = vld [vmem:[%s0 + $0x20] sm:$0xff]
  %v166 = vld [vmem:[%s0 + $0x28] sm:$0xff]
  %v167 = vld [vmem:[%s0 + $0x30] sm:$0xff]
  %v168 = vld [vmem:[%s0 + $0x38] sm:$0xff]
  %v169 = vld [vmem:[%s0 + $0x40] sm:$0xff]
  %179 = vrot.lane.b32.xlu0 %v161, 106
  %v180 = vpop.permute.xlu0 %179
  %181 = vrot.lane.b32.xlu0 %v162, 106
  %v182 = vpop.permute.xlu0 %181
  %183 = vrot.lane.b32.xlu0 %v163, 106
  %v184 = vpop.permute.xlu0 %183
  %185 = vrot.lane.b32.xlu0 %v164, 106
  %v186 = vpop.permute.xlu0 %185
  %187 = vrot.lane.b32.xlu0 %v165, 106
  %v188 = vpop.permute.xlu0 %187
  %189 = vrot.lane.b32.xlu0 %v166, 106
  %v190 = vpop.permute.xlu0 %189
  %191 = vrot.lane.b32.xlu0 %v167, 106
  %v192 = vpop.permute.xlu0 %191
  %193 = vrot.lane.b32.xlu0 %v168, 106
  %v194 = vpop.permute.xlu0 %193
  %195 = vrot.lane.b32.xlu0 %v169, 106
  %v196 = vpop.permute.xlu0 %195
  %vm197 = vcmask 867328
  %v198 = vsel %vm197, %v180, %v182
  %v199 = vsel %vm197, %v182, %v184
  %v200 = vsel %vm197, %v184, %v186
  %v201 = vsel %vm197, %v186, %v188
  %v202 = vsel %vm197, %v188, %v190
  %v203 = vsel %vm197, %v190, %v192
  %v204 = vsel %vm197, %v192, %v194
  %v205 = vsel %vm197, %v194, %v196
  %214 = vst [vmem:[#allocation2 + $0xc0] sm:$0xff] %v198
  %215 = vst [vmem:[#allocation2 + $0xc8] sm:$0xff] %v199
  %216 = vst [vmem:[#allocation2 + $0xd0] sm:$0xff] %v200
  %217 = vst [vmem:[#allocation2 + $0xd8] sm:$0xff] %v201
  %218 = vst [vmem:[#allocation2 + $0xe0] sm:$0xff] %v202
  %219 = vst [vmem:[#allocation2 + $0xe8] sm:$0xff] %v203
  %220 = vst [vmem:[#allocation2 + $0xf0] sm:$0xff] %v204
  %221 = vst.msk [vmem:[#allocation2 + $0xf8] sm:$0xff] %vm47, %v205
  %v222 = vld [vmem:[%s0] sm:$0xff]
  %v223 = vld [vmem:[%s0 + $0x8] sm:$0xff]
  %v224 = vld [vmem:[%s0 + $0x10] sm:$0xff]
  %v225 = vld [vmem:[%s0 + $0x18] sm:$0xff]
  %v226 = vld [vmem:[%s0 + $0x20] sm:$0xff]
  %v227 = vld [vmem:[%s0 + $0x28] sm:$0xff]
  %v228 = vld [vmem:[%s0 + $0x30] sm:$0xff]
  %v229 = vld [vmem:[%s0 + $0x38] sm:$0xff]
  %v230 = vld [vmem:[%s0 + $0x40] sm:$0xff]
  %240 = vrot.lane.b32.xlu0 %v222, 105
  %v241 = vpop.permute.xlu0 %240
  %242 = vrot.lane.b32.xlu0 %v223, 105
  %v243 = vpop.permute.xlu0 %242
  %244 = vrot.lane.b32.xlu0 %v224, 105
  %v245 = vpop.permute.xlu0 %244
  %246 = vrot.lane.b32.xlu0 %v225, 105
  %v247 = vpop.permute.xlu0 %246
  %248 = vrot.lane.b32.xlu0 %v226, 105
  %v249 = vpop.permute.xlu0 %248
  %250 = vrot.lane.b32.xlu0 %v227, 105
  %v251 = vpop.permute.xlu0 %250
  %252 = vrot.lane.b32.xlu0 %v228, 105
  %v253 = vpop.permute.xlu0 %252
  %254 = vrot.lane.b32.xlu0 %v229, 105
  %v255 = vpop.permute.xlu0 %254
  %256 = vrot.lane.b32.xlu0 %v230, 105
  %v257 = vpop.permute.xlu0 %256
  %vm258 = vcmask 859136
  %v259 = vsel %vm258, %v241, %v243
  %v260 = vsel %vm258, %v243, %v245
  %v261 = vsel %vm258, %v245, %v247
  %v262 = vsel %vm258, %v247, %v249
  %v263 = vsel %vm258, %v249, %v251
  %v264 = vsel %vm258, %v251, %v253
  %v265 = vsel %vm258, %v253, %v255
  %v266 = vsel %vm258, %v255, %v257
  %275 = vst [vmem:[#allocation2 + $0x100] sm:$0xff] %v259
  %276 = vst [vmem:[#allocation2 + $0x108] sm:$0xff] %v260
  %277 = vst [vmem:[#allocation2 + $0x110] sm:$0xff] %v261
  %278 = vst [vmem:[#allocation2 + $0x118] sm:$0xff] %v262
  %279 = vst [vmem:[#allocation2 + $0x120] sm:$0xff] %v263
  %280 = vst [vmem:[#allocation2 + $0x128] sm:$0xff] %v264
  %281 = vst [vmem:[#allocation2 + $0x130] sm:$0xff] %v265
  %282 = vst.msk [vmem:[#allocation2 + $0x138] sm:$0xff] %vm47, %v266
  %v283 = vld [vmem:[%s0] sm:$0xff]
  %v284 = vld [vmem:[%s0 + $0x8] sm:$0xff]
  %v285 = vld [vmem:[%s0 + $0x10] sm:$0xff]
  %v286 = vld [vmem:[%s0 + $0x18] sm:$0xff]
  %v287 = vld [vmem:[%s0 + $0x20] sm:$0xff]
  %v288 = vld [vmem:[%s0 + $0x28] sm:$0xff]
  %v289 = vld [vmem:[%s0 + $0x30] sm:$0xff]
  %v290 = vld [vmem:[%s0 + $0x38] sm:$0xff]
  %v291 = vld [vmem:[%s0 + $0x40] sm:$0xff]
  %301 = vrot.lane.b32.xlu0 %v283, 104
  %v302 = vpop.permute.xlu0 %301
  %303 = vrot.lane.b32.xlu0 %v284, 104
  %v304 = vpop.permute.xlu0 %303
  %305 = vrot.lane.b32.xlu0 %v285, 104
  %v306 = vpop.permute.xlu0 %305
  %307 = vrot.lane.b32.xlu0 %v286, 104
  %v308 = vpop.permute.xlu0 %307
  %309 = vrot.lane.b32.xlu0 %v287, 104
  %v310 = vpop.permute.xlu0 %309
  %311 = vrot.lane.b32.xlu0 %v288, 104
  %v312 = vpop.permute.xlu0 %311
  %313 = vrot.lane.b32.xlu0 %v289, 104
  %v314 = vpop.permute.xlu0 %313
  %315 = vrot.lane.b32.xlu0 %v290, 104
  %v316 = vpop.permute.xlu0 %315
  %317 = vrot.lane.b32.xlu0 %v291, 104
  %v318 = vpop.permute.xlu0 %317
  %vm319 = vcmask 850944
  %v320 = vsel %vm319, %v302, %v304
  %v321 = vsel %vm319, %v304, %v306
  %v322 = vsel %vm319, %v306, %v308
  %v323 = vsel %vm319, %v308, %v310
  %v324 = vsel %vm319, %v310, %v312
  %v325 = vsel %vm319, %v312, %v314
  %v326 = vsel %vm319, %v314, %v316
  %v327 = vsel %vm319, %v316, %v318
  %336 = vst [vmem:[#allocation2 + $0x140] sm:$0xff] %v320
  %337 = vst [vmem:[#allocation2 + $0x148] sm:$0xff] %v321
  %338 = vst [vmem:[#allocation2 + $0x150] sm:$0xff] %v322
  %339 = vst [vmem:[#allocation2 + $0x158] sm:$0xff] %v323
  %340 = vst [vmem:[#allocation2 + $0x160] sm:$0xff] %v324
  %341 = vst [vmem:[#allocation2 + $0x168] sm:$0xff] %v325
  %342 = vst [vmem:[#allocation2 + $0x170] sm:$0xff] %v326
  %343 = vst.msk [vmem:[#allocation2 + $0x178] sm:$0xff] %vm47, %v327
  %v344 = vld [vmem:[%s0] sm:$0xff]
  %v345 = vld [vmem:[%s0 + $0x8] sm:$0xff]
  %v346 = vld [vmem:[%s0 + $0x10] sm:$0xff]
  %v347 = vld [vmem:[%s0 + $0x18] sm:$0xff]
  %v348 = vld [vmem:[%s0 + $0x20] sm:$0xff]
  %v349 = vld [vmem:[%s0 + $0x28] sm:$0xff]
  %v350 = vld [vmem:[%s0 + $0x30] sm:$0xff]
  %v351 = vld [vmem:[%s0 + $0x38] sm:$0xff]
  %v352 = vld [vmem:[%s0 + $0x40] sm:$0xff]
  %362 = vrot.lane.b32.xlu0 %v344, 84
  %v363 = vpop.permute.xlu0 %362
  %364 = vrot.lane.b32.xlu0 %v345, 84
  %v365 = vpop.permute.xlu0 %364
  %366 = vrot.lane.b32.xlu0 %v346, 84
  %v367 = vpop.permute.xlu0 %366
  %368 = vrot.lane.b32.xlu0 %v347, 84
  %v369 = vpop.permute.xlu0 %368
  %370 = vrot.lane.b32.xlu0 %v348, 84
  %v371 = vpop.permute.xlu0 %370
  %372 = vrot.lane.b32.xlu0 %v349, 84
  %v373 = vpop.permute.xlu0 %372
  %374 = vrot.lane.b32.xlu0 %v350, 84
  %v375 = vpop.permute.xlu0 %374
  %376 = vrot.lane.b32.xlu0 %v351, 84
  %v377 = vpop.permute.xlu0 %376
  %378 = vrot.lane.b32.xlu0 %v352, 84
  %v379 = vpop.permute.xlu0 %378
  %vm380 = vcmask 687104
  %v381 = vsel %vm380, %v363, %v365
  %v382 = vsel %vm380, %v365, %v367
  %v383 = vsel %vm380, %v367, %v369
  %v384 = vsel %vm380, %v369, %v371
  %v385 = vsel %vm380, %v371, %v373
  %v386 = vsel %vm380, %v373, %v375
  %v387 = vsel %vm380, %v375, %v377
  %v388 = vsel %vm380, %v377, %v379
  %397 = vst [vmem:[#allocation2 + $0x180] sm:$0xff] %v381
  %398 = vst [vmem:[#allocation2 + $0x188] sm:$0xff] %v382
  %399 = vst [vmem:[#allocation2 + $0x190] sm:$0xff] %v383
  %400 = vst [vmem:[#allocation2 + $0x198] sm:$0xff] %v384
  %401 = vst [vmem:[#allocation2 + $0x1a0] sm:$0xff] %v385
  %402 = vst [vmem:[#allocation2 + $0x1a8] sm:$0xff] %v386
  %403 = vst [vmem:[#allocation2 + $0x1b0] sm:$0xff] %v387
  %404 = vst.msk [vmem:[#allocation2 + $0x1b8] sm:$0xff] %vm47, %v388
  %v405 = vld [vmem:[%s0] sm:$0xff]
  %v406 = vld [vmem:[%s0 + $0x8] sm:$0xff]
  %v407 = vld [vmem:[%s0 + $0x10] sm:$0xff]
  %v408 = vld [vmem:[%s0 + $0x18] sm:$0xff]
  %v409 = vld [vmem:[%s0 + $0x20] sm:$0xff]
  %v410 = vld [vmem:[%s0 + $0x28] sm:$0xff]
  %v411 = vld [vmem:[%s0 + $0x30] sm:$0xff]
  %v412 = vld [vmem:[%s0 + $0x38] sm:$0xff]
  %v413 = vld [vmem:[%s0 + $0x40] sm:$0xff]
  %423 = vrot.lane.b32.xlu0 %v405, 83
  %v424 = vpop.permute.xlu0 %423
  %425 = vrot.lane.b32.xlu0 %v406, 83
  %v426 = vpop.permute.xlu0 %425
  %427 = vrot.lane.b32.xlu0 %v407, 83
  %v428 = vpop.permute.xlu0 %427
  %429 = vrot.lane.b32.xlu0 %v408, 83
  %v430 = vpop.permute.xlu0 %429
  %431 = vrot.lane.b32.xlu0 %v409, 83
  %v432 = vpop.permute.xlu0 %431
  %433 = vrot.lane.b32.xlu0 %v410, 83
  %v434 = vpop.permute.xlu0 %433
  %435 = vrot.lane.b32.xlu0 %v411, 83
  %v436 = vpop.permute.xlu0 %435
  %437 = vrot.lane.b32.xlu0 %v412, 83
  %v438 = vpop.permute.xlu0 %437
  %439 = vrot.lane.b32.xlu0 %v413, 83
  %v440 = vpop.permute.xlu0 %439
  %vm441 = vcmask 678912
  %v442 = vsel %vm441, %v424, %v426
  %v443 = vsel %vm441, %v426, %v428
  %v444 = vsel %vm441, %v428, %v430
  %v445 = vsel %vm441, %v430, %v432
  %v446 = vsel %vm441, %v432, %v434
  %v447 = vsel %vm441, %v434, %v436
  %v448 = vsel %vm441, %v436, %v438
  %v449 = vsel %vm441, %v438, %v440
  %458 = vst [vmem:[#allocation2 + $0x1c0] sm:$0xff] %v442
  %459 = vst [vmem:[#allocation2 + $0x1c8] sm:$0xff] %v443
  %460 = vst [vmem:[#allocation2 + $0x1d0] sm:$0xff] %v444
  %461 = vst [vmem:[#allocation2 + $0x1d8] sm:$0xff] %v445
  %462 = vst [vmem:[#allocation2 + $0x1e0] sm:$0xff] %v446
  %463 = vst [vmem:[#allocation2 + $0x1e8] sm:$0xff] %v447
  %464 = vst [vmem:[#allocation2 + $0x1f0] sm:$0xff] %v448
  %465 = vst.msk [vmem:[#allocation2 + $0x1f8] sm:$0xff] %vm47, %v449
  %v466 = vld [vmem:[%s0] sm:$0xff]
  %v467 = vld [vmem:[%s0 + $0x8] sm:$0xff]
  %v468 = vld [vmem:[%s0 + $0x10] sm:$0xff]
  %v469 = vld [vmem:[%s0 + $0x18] sm:$0xff]
  %v470 = vld [vmem:[%s0 + $0x20] sm:$0xff]
  %v471 = vld [vmem:[%s0 + $0x28] sm:$0xff]
  %v472 = vld [vmem:[%s0 + $0x30] sm:$0xff]
  %v473 = vld [vmem:[%s0 + $0x38] sm:$0xff]
  %v474 = vld [vmem:[%s0 + $0x40] sm:$0xff]
  %484 = vrot.lane.b32.xlu0 %v466, 82
  %v485 = vpop.permute.xlu0 %484
  %486 = vrot.lane.b32.xlu0 %v467, 82
  %v487 = vpop.permute.xlu0 %486
  %488 = vrot.lane.b32.xlu0 %v468, 82
  %v489 = vpop.permute.xlu0 %488
  %490 = vrot.lane.b32.xlu0 %v469, 82
  %v491 = vpop.permute.xlu0 %490
  %492 = vrot.lane.b32.xlu0 %v470, 82
  %v493 = vpop.permute.xlu0 %492
  %494 = vrot.lane.b32.xlu0 %v471, 82
  %v495 = vpop.permute.xlu0 %494
  %496 = vrot.lane.b32.xlu0 %v472, 82
  %v497 = vpop.permute.xlu0 %496
  %498 = vrot.lane.b32.xlu0 %v473, 82
  %v499 = vpop.permute.xlu0 %498
  %500 = vrot.lane.b32.xlu0 %v474, 82
  %v501 = vpop.permute.xlu0 %500
  %vm502 = vcmask 670720
  %v503 = vsel %vm502, %v485, %v487
  %v504 = vsel %vm502, %v487, %v489
  %v505 = vsel %vm502, %v489, %v491
  %v506 = vsel %vm502, %v491, %v493
  %v507 = vsel %vm502, %v493, %v495
  %v508 = vsel %vm502, %v495, %v497
  %v509 = vsel %vm502, %v497, %v499
  %v510 = vsel %vm502, %v499, %v501
  %519 = vst [vmem:[#allocation2 + $0x200] sm:$0xff] %v503
  %520 = vst [vmem:[#allocation2 + $0x208] sm:$0xff] %v504
  %521 = vst [vmem:[#allocation2 + $0x210] sm:$0xff] %v505
  %522 = vst [vmem:[#allocation2 + $0x218] sm:$0xff] %v506
  %523 = vst [vmem:[#allocation2 + $0x220] sm:$0xff] %v507
  %524 = vst [vmem:[#allocation2 + $0x228] sm:$0xff] %v508
  %525 = vst [vmem:[#allocation2 + $0x230] sm:$0xff] %v509
  %526 = vst.msk [vmem:[#allocation2 + $0x238] sm:$0xff] %vm47, %v510
  %v527 = vld [vmem:[%s1] sm:$0xff]
  %v528 = vld [vmem:[#allocation2] sm:$0xff]
  %v529 = vld [vmem:[#allocation2 + $0x8] sm:$0xff]
  %v530 = vld [vmem:[#allocation2 + $0x10] sm:$0xff]
  %v531 = vld [vmem:[#allocation2 + $0x18] sm:$0xff]
  %v532 = vld [vmem:[#allocation2 + $0x20] sm:$0xff]
  %v533 = vld [vmem:[#allocation2 + $0x28] sm:$0xff]
  %v534 = vld [vmem:[#allocation2 + $0x30] sm:$0xff]
  %v535 = vld [vmem:[#allocation2 + $0x38] sm:$0xff]
  %v536 = vld [vmem:[#allocation2 + $0x40] sm:$0xff]
  %v537 = vld [vmem:[#allocation2 + $0x48] sm:$0xff]
  %v538 = vld [vmem:[#allocation2 + $0x50] sm:$0xff]
  %v539 = vld [vmem:[#allocation2 + $0x58] sm:$0xff]
  %v540 = vld [vmem:[#allocation2 + $0x60] sm:$0xff]
  %v541 = vld [vmem:[#allocation2 + $0x68] sm:$0xff]
  %v542 = vld [vmem:[#allocation2 + $0x70] sm:$0xff]
  %v543 = vld [vmem:[#allocation2 + $0x78] sm:$0xff]
  %v544 = vld [vmem:[#allocation2 + $0x80] sm:$0xff]
  %v545 = vld [vmem:[#allocation2 + $0x88] sm:$0xff]
  %v546 = vld [vmem:[#allocation2 + $0x90] sm:$0xff]
  %v547 = vld [vmem:[#allocation2 + $0x98] sm:$0xff]
  %v548 = vld [vmem:[#allocation2 + $0xa0] sm:$0xff]
  %v549 = vld [vmem:[#allocation2 + $0xa8] sm:$0xff]
  %v550 = vld [vmem:[#allocation2 + $0xb0] sm:$0xff]
  %v551 = vld [vmem:[#allocation2 + $0xb8] sm:$0xff]
  %v552 = vld [vmem:[#allocation2 + $0xc0] sm:$0xff]
  %v553 = vld [vmem:[#allocation2 + $0xc8] sm:$0xff]
  %v554 = vld [vmem:[#allocation2 + $0xd0] sm:$0xff]
  %v555 = vld [vmem:[#allocation2 + $0xd8] sm:$0xff]
  %v556 = vld [vmem:[#allocation2 + $0xe0] sm:$0xff]
  %v557 = vld [vmem:[#allocation2 + $0xe8] sm:$0xff]
  %v558 = vld [vmem:[#allocation2 + $0xf0] sm:$0xff]
  %v559 = vld [vmem:[#allocation2 + $0xf8] sm:$0xff]
  %v560 = vld [vmem:[#allocation2 + $0x100] sm:$0xff]
  %v561 = vld [vmem:[#allocation2 + $0x108] sm:$0xff]
  %v562 = vld [vmem:[#allocation2 + $0x110] sm:$0xff]
  %v563 = vld [vmem:[#allocation2 + $0x118] sm:$0xff]
  %v564 = vld [vmem:[#allocation2 + $0x120] sm:$0xff]
  %v565 = vld [vmem:[#allocation2 + $0x128] sm:$0xff]
  %v566 = vld [vmem:[#allocation2 + $0x130] sm:$0xff]
  %v567 = vld [vmem:[#allocation2 + $0x138] sm:$0xff]
  %v568 = vld [vmem:[#allocation2 + $0x140] sm:$0xff]
  %v569 = vld [vmem:[#allocation2 + $0x148] sm:$0xff]
  %v570 = vld [vmem:[#allocation2 + $0x150] sm:$0xff]
  %v571 = vld [vmem:[#allocation2 + $0x158] sm:$0xff]
  %v572 = vld [vmem:[#allocation2 + $0x160] sm:$0xff]
  %v573 = vld [vmem:[#allocation2 + $0x168] sm:$0xff]
  %v574 = vld [vmem:[#allocation2 + $0x170] sm:$0xff]
  %v575 = vld [vmem:[#allocation2 + $0x178] sm:$0xff]
  %v576 = vld [vmem:[#allocation2 + $0x180] sm:$0xff]
  %v577 = vld [vmem:[#allocation2 + $0x188] sm:$0xff]
  %v578 = vld [vmem:[#allocation2 + $0x190] sm:$0xff]
  %v579 = vld [vmem:[#allocation2 + $0x198] sm:$0xff]
  %v580 = vld [vmem:[#allocation2 + $0x1a0] sm:$0xff]
  %v581 = vld [vmem:[#allocation2 + $0x1a8] sm:$0xff]
  %v582 = vld [vmem:[#allocation2 + $0x1b0] sm:$0xff]
  %v583 = vld [vmem:[#allocation2 + $0x1b8] sm:$0xff]
  %v584 = vld [vmem:[#allocation2 + $0x1c0] sm:$0xff]
  %v585 = vld [vmem:[#allocation2 + $0x1c8] sm:$0xff]
  %v586 = vld [vmem:[#allocation2 + $0x1d0] sm:$0xff]
  %v587 = vld [vmem:[#allocation2 + $0x1d8] sm:$0xff]
  %v588 = vld [vmem:[#allocation2 + $0x1e0] sm:$0xff]
  %v589 = vld [vmem:[#allocation2 + $0x1e8] sm:$0xff]
  %v590 = vld [vmem:[#allocation2 + $0x1f0] sm:$0xff]
  %v591 = vld [vmem:[#allocation2 + $0x1f8] sm:$0xff]
  %v592 = vld [vmem:[#allocation2 + $0x200] sm:$0xff]
  %v593 = vld [vmem:[#allocation2 + $0x208] sm:$0xff]
  %v594 = vld [vmem:[#allocation2 + $0x210] sm:$0xff]
  %v595 = vld [vmem:[#allocation2 + $0x218] sm:$0xff]
  %v596 = vld [vmem:[#allocation2 + $0x220] sm:$0xff]
  %v597 = vld [vmem:[#allocation2 + $0x228] sm:$0xff]
  %v598 = vld [vmem:[#allocation2 + $0x230] sm:$0xff]
  %v599 = vld [vmem:[#allocation2 + $0x238] sm:$0xff]
  %vm600 = vcmask 588800
  %v602 = vsel %vm600, %v527, 0
  %604 = vmatprep.subr.mxu0 %v529
  %605 = vmatpush1.msra.mxu0 %v528
  %606 = vmatprep.subr.mxu0 %v537
  %607 = vmatpush1.msra.mxu0 %v536
  %608 = vmatprep.subr.mxu0 %v545
  %609 = vmatpush1.msra.mxu0 %v544
  %610 = vmatprep.subr.mxu0 %v553
  %611 = vmatpush1.msra.mxu0 %v552
  %612 = vmatprep.subr.mxu0 %v561
  %613 = vmatpush1.msra.mxu0 %v560
  %614 = vmatprep.subr.mxu0 %v569
  %615 = vmatpush1.msra.mxu0 %v568
  %616 = vmatprep.subr.mxu0 %v577
  %617 = vmatpush1.msra.mxu0 %v576
  %618 = vmatprep.subr.mxu0 %v585
  %619 = vmatpush1.msra.mxu0 %v584
  %620 = vmatprep.subr.mxu0 %v593
  %621 = vmatpush1.msra.mxu0 %v592
  %622 = vmatprep.subr.mxu0 0.0
  %623 = vmatpush1.msra.mxu0 0.0
  %624 = vmatprep.subr.mxu0 0.0
  %625 = vmatpush1.msra.mxu0 0.0
  %626 = vmatprep.subr.mxu0 0.0
  %627 = vmatpush1.msra.mxu0 0.0
  %628 = vmatprep.subr.mxu0 0.0
  %629 = vmatpush1.msra.mxu0 0.0
  %630 = vmatprep.subr.mxu0 0.0
  %631 = vmatpush1.msra.mxu0 0.0
  %632 = vmatprep.subr.mxu0 0.0
  %633 = vmatpush1.msra.mxu0 0.0
  %634 = vmatprep.subr.mxu0 0.0
  %635 = vmatpush1.msra.mxu0 0.0
  %636 = vmatprep.subr.mxu0 0.0
  %637 = vmatpush1.msra.mxu0 0.0
  %638 = vmatprep.subr.mxu0 0.0
  %639 = vmatpush1.msra.mxu0 0.0
  %640 = vmatprep.subr.mxu0 0.0
  %641 = vmatpush1.msra.mxu0 0.0
  %642 = vmatprep.subr.mxu0 0.0
  %643 = vmatpush1.msra.mxu0 0.0
  %644 = vmatprep.subr.mxu0 0.0
  %645 = vmatpush1.msra.mxu0 0.0
  %646 = vmatprep.subr.mxu0 0.0
  %647 = vmatpush1.msra.mxu0 0.0
  %648 = vmatprep.subr.mxu0 0.0
  %649 = vmatpush1.msra.mxu0 0.0
  %650 = vmatprep.subr.mxu0 0.0
  %651 = vmatpush1.msra.mxu0 0.0
  %652 = vmatprep.subr.mxu0 0.0
  %653 = vmatpush1.msra.mxu0 0.0
  %654 = vmatprep.subr.mxu0 0.0
  %655 = vmatpush1.msra.mxu0 0.0
  %656 = vmatprep.subr.mxu0 0.0
  %657 = vmatpush1.msra.mxu0 0.0
  %658 = vmatprep.subr.mxu0 0.0
  %659 = vmatpush1.msra.mxu0 0.0
  %660 = vmatprep.subr.mxu0 0.0
  %661 = vmatpush1.msra.mxu0 0.0
  %662 = vmatprep.subr.mxu0 0.0
  %663 = vmatpush1.msra.mxu0 0.0
  %664 = vmatprep.subr.mxu0 0.0
  %665 = vmatpush1.msra.mxu0 0.0
  %666 = vmatprep.subr.mxu0 0.0
  %667 = vmatpush1.msra.mxu0 0.0
  %668 = vmatprep.mubr.f32.mxu0 0.0
  %669 = vmatmul.mubr.f32.gmra.mrb[0].mxu0 %v602
  %v670 = vpop.f32.mrb[0].mxu0
  %v671 = vadd.f32 0.0, %v670
  %v672 = vpop.f32.mrb[0].mxu0
  %v673 = vadd.f32 0.0, %v672
  %674 = vdwg.mxu0
  %675 = vmatprep.subr.mxu0 %v531
  %676 = vmatpush1.msra.mxu0 %v530
  %677 = vmatprep.subr.mxu0 %v539
  %678 = vmatpush1.msra.mxu0 %v538
  %679 = vmatprep.subr.mxu0 %v547
  %680 = vmatpush1.msra.mxu0 %v546
  %681 = vmatprep.subr.mxu0 %v555
  %682 = vmatpush1.msra.mxu0 %v554
  %683 = vmatprep.subr.mxu0 %v563
  %684 = vmatpush1.msra.mxu0 %v562
  %685 = vmatprep.subr.mxu0 %v571
  %686 = vmatpush1.msra.mxu0 %v570
  %687 = vmatprep.subr.mxu0 %v579
  %688 = vmatpush1.msra.mxu0 %v578
  %689 = vmatprep.subr.mxu0 %v587
  %690 = vmatpush1.msra.mxu0 %v586
  %691 = vmatprep.subr.mxu0 %v595
  %692 = vmatpush1.msra.mxu0 %v594
  %693 = vmatprep.subr.mxu0 0.0
  %694 = vmatpush1.msra.mxu0 0.0
  %695 = vmatprep.subr.mxu0 0.0
  %696 = vmatpush1.msra.mxu0 0.0
  %697 = vmatprep.subr.mxu0 0.0
  %698 = vmatpush1.msra.mxu0 0.0
  %699 = vmatprep.subr.mxu0 0.0
  %700 = vmatpush1.msra.mxu0 0.0
  %701 = vmatprep.subr.mxu0 0.0
  %702 = vmatpush1.msra.mxu0 0.0
  %703 = vmatprep.subr.mxu0 0.0
  %704 = vmatpush1.msra.mxu0 0.0
  %705 = vmatprep.subr.mxu0 0.0
  %706 = vmatpush1.msra.mxu0 0.0
  %707 = vmatprep.subr.mxu0 0.0
  %708 = vmatpush1.msra.mxu0 0.0
  %709 = vmatprep.subr.mxu0 0.0
  %710 = vmatpush1.msra.mxu0 0.0
  %711 = vmatprep.subr.mxu0 0.0
  %712 = vmatpush1.msra.mxu0 0.0
  %713 = vmatprep.subr.mxu0 0.0
  %714 = vmatpush1.msra.mxu0 0.0
  %715 = vmatprep.subr.mxu0 0.0
  %716 = vmatpush1.msra.mxu0 0.0
  %717 = vmatprep.subr.mxu0 0.0
  %718 = vmatpush1.msra.mxu0 0.0
  %719 = vmatprep.subr.mxu0 0.0
  %720 = vmatpush1.msra.mxu0 0.0
  %721 = vmatprep.subr.mxu0 0.0
  %722 = vmatpush1.msra.mxu0 0.0
  %723 = vmatprep.subr.mxu0 0.0
  %724 = vmatpush1.msra.mxu0 0.0
  %725 = vmatprep.subr.mxu0 0.0
  %726 = vmatpush1.msra.mxu0 0.0
  %727 = vmatprep.subr.mxu0 0.0
  %728 = vmatpush1.msra.mxu0 0.0
  %729 = vmatprep.subr.mxu0 0.0
  %730 = vmatpush1.msra.mxu0 0.0
  %731 = vmatprep.subr.mxu0 0.0
  %732 = vmatpush1.msra.mxu0 0.0
  %733 = vmatprep.subr.mxu0 0.0
  %734 = vmatpush1.msra.mxu0 0.0
  %735 = vmatprep.subr.mxu0 0.0
  %736 = vmatpush1.msra.mxu0 0.0
  %737 = vmatprep.subr.mxu0 0.0
  %738 = vmatpush1.msra.mxu0 0.0
  %739 = vmatprep.mubr.f32.mxu0 0.0
  %740 = vmatmul.mubr.f32.gmra.mrb[0].mxu0 %v602
  %v741 = vpop.f32.mrb[0].mxu0
  %v742 = vadd.f32 0.0, %v741
  %v743 = vpop.f32.mrb[0].mxu0
  %v744 = vadd.f32 0.0, %v743
  %745 = vdwg.mxu0
  %746 = vmatprep.subr.mxu0 %v533
  %747 = vmatpush1.msra.mxu0 %v532
  %748 = vmatprep.subr.mxu0 %v541
  %749 = vmatpush1.msra.mxu0 %v540
  %750 = vmatprep.subr.mxu0 %v549
  %751 = vmatpush1.msra.mxu0 %v548
  %752 = vmatprep.subr.mxu0 %v557
  %753 = vmatpush1.msra.mxu0 %v556
  %754 = vmatprep.subr.mxu0 %v565
  %755 = vmatpush1.msra.mxu0 %v564
  %756 = vmatprep.subr.mxu0 %v573
  %757 = vmatpush1.msra.mxu0 %v572
  %758 = vmatprep.subr.mxu0 %v581
  %759 = vmatpush1.msra.mxu0 %v580
  %760 = vmatprep.subr.mxu0 %v589
  %761 = vmatpush1.msra.mxu0 %v588
  %762 = vmatprep.subr.mxu0 %v597
  %763 = vmatpush1.msra.mxu0 %v596
  %764 = vmatprep.subr.mxu0 0.0
  %765 = vmatpush1.msra.mxu0 0.0
  %766 = vmatprep.subr.mxu0 0.0
  %767 = vmatpush1.msra.mxu0 0.0
  %768 = vmatprep.subr.mxu0 0.0
  %769 = vmatpush1.msra.mxu0 0.0
  %770 = vmatprep.subr.mxu0 0.0
  %771 = vmatpush1.msra.mxu0 0.0
  %772 = vmatprep.subr.mxu0 0.0
  %773 = vmatpush1.msra.mxu0 0.0
  %774 = vmatprep.subr.mxu0 0.0
  %775 = vmatpush1.msra.mxu0 0.0
  %776 = vmatprep.subr.mxu0 0.0
  %777 = vmatpush1.msra.mxu0 0.0
  %778 = vmatprep.subr.mxu0 0.0
  %779 = vmatpush1.msra.mxu0 0.0
  %780 = vmatprep.subr.mxu0 0.0
  %781 = vmatpush1.msra.mxu0 0.0
  %782 = vmatprep.subr.mxu0 0.0
  %783 = vmatpush1.msra.mxu0 0.0
  %784 = vmatprep.subr.mxu0 0.0
  %785 = vmatpush1.msra.mxu0 0.0
  %786 = vmatprep.subr.mxu0 0.0
  %787 = vmatpush1.msra.mxu0 0.0
  %788 = vmatprep.subr.mxu0 0.0
  %789 = vmatpush1.msra.mxu0 0.0
  %790 = vmatprep.subr.mxu0 0.0
  %791 = vmatpush1.msra.mxu0 0.0
  %792 = vmatprep.subr.mxu0 0.0
  %793 = vmatpush1.msra.mxu0 0.0
  %794 = vmatprep.subr.mxu0 0.0
  %795 = vmatpush1.msra.mxu0 0.0
  %796 = vmatprep.subr.mxu0 0.0
  %797 = vmatpush1.msra.mxu0 0.0
  %798 = vmatprep.subr.mxu0 0.0
  %799 = vmatpush1.msra.mxu0 0.0
  %800 = vmatprep.subr.mxu0 0.0
  %801 = vmatpush1.msra.mxu0 0.0
  %802 = vmatprep.subr.mxu0 0.0
  %803 = vmatpush1.msra.mxu0 0.0
  %804 = vmatprep.subr.mxu0 0.0
  %805 = vmatpush1.msra.mxu0 0.0
  %806 = vmatprep.subr.mxu0 0.0
  %807 = vmatpush1.msra.mxu0 0.0
  %808 = vmatprep.subr.mxu0 0.0
  %809 = vmatpush1.msra.mxu0 0.0
  %810 = vmatprep.mubr.f32.mxu0 0.0
  %811 = vmatmul.mubr.f32.gmra.mrb[0].mxu0 %v602
  %v812 = vpop.f32.mrb[0].mxu0
  %v813 = vadd.f32 0.0, %v812
  %v814 = vpop.f32.mrb[0].mxu0
  %v815 = vadd.f32 0.0, %v814
  %816 = vdwg.mxu0
  %817 = vmatprep.subr.mxu0 %v535
  %818 = vmatpush1.msra.mxu0 %v534
  %819 = vmatprep.subr.mxu0 %v543
  %820 = vmatpush1.msra.mxu0 %v542
  %821 = vmatprep.subr.mxu0 %v551
  %822 = vmatpush1.msra.mxu0 %v550
  %823 = vmatprep.subr.mxu0 %v559
  %824 = vmatpush1.msra.mxu0 %v558
  %825 = vmatprep.subr.mxu0 %v567
  %826 = vmatpush1.msra.mxu0 %v566
  %827 = vmatprep.subr.mxu0 %v575
  %828 = vmatpush1.msra.mxu0 %v574
  %829 = vmatprep.subr.mxu0 %v583
  %830 = vmatpush1.msra.mxu0 %v582
  %831 = vmatprep.subr.mxu0 %v591
  %832 = vmatpush1.msra.mxu0 %v590
  %833 = vmatprep.subr.mxu0 %v599
  %834 = vmatpush1.msra.mxu0 %v598
  %835 = vmatprep.subr.mxu0 0.0
  %836 = vmatpush1.msra.mxu0 0.0
  %837 = vmatprep.subr.mxu0 0.0
  %838 = vmatpush1.msra.mxu0 0.0
  %839 = vmatprep.subr.mxu0 0.0
  %840 = vmatpush1.msra.mxu0 0.0
  %841 = vmatprep.subr.mxu0 0.0
  %842 = vmatpush1.msra.mxu0 0.0
  %843 = vmatprep.subr.mxu0 0.0
  %844 = vmatpush1.msra.mxu0 0.0
  %845 = vmatprep.subr.mxu0 0.0
  %846 = vmatpush1.msra.mxu0 0.0
  %847 = vmatprep.subr.mxu0 0.0
  %848 = vmatpush1.msra.mxu0 0.0
  %849 = vmatprep.subr.mxu0 0.0
  %850 = vmatpush1.msra.mxu0 0.0
  %851 = vmatprep.subr.mxu0 0.0
  %852 = vmatpush1.msra.mxu0 0.0
  %853 = vmatprep.subr.mxu0 0.0
  %854 = vmatpush1.msra.mxu0 0.0
  %855 = vmatprep.subr.mxu0 0.0
  %856 = vmatpush1.msra.mxu0 0.0
  %857 = vmatprep.subr.mxu0 0.0
  %858 = vmatpush1.msra.mxu0 0.0
  %859 = vmatprep.subr.mxu0 0.0
  %860 = vmatpush1.msra.mxu0 0.0
  %861 = vmatprep.subr.mxu0 0.0
  %862 = vmatpush1.msra.mxu0 0.0
  %863 = vmatprep.subr.mxu0 0.0
  %864 = vmatpush1.msra.mxu0 0.0
  %865 = vmatprep.subr.mxu0 0.0
  %866 = vmatpush1.msra.mxu0 0.0
  %867 = vmatprep.subr.mxu0 0.0
  %868 = vmatpush1.msra.mxu0 0.0
  %869 = vmatprep.subr.mxu0 0.0
  %870 = vmatpush1.msra.mxu0 0.0
  %871 = vmatprep.subr.mxu0 0.0
  %872 = vmatpush1.msra.mxu0 0.0
  %873 = vmatprep.subr.mxu0 0.0
  %874 = vmatpush1.msra.mxu0 0.0
  %875 = vmatprep.subr.mxu0 0.0
  %876 = vmatpush1.msra.mxu0 0.0
  %877 = vmatprep.subr.mxu0 0.0
  %878 = vmatpush1.msra.mxu0 0.0
  %879 = vmatprep.subr.mxu0 0.0
  %880 = vmatpush1.msra.mxu0 0.0
  %881 = vmatprep.mubr.f32.mxu0 0.0
  %882 = vmatmul.mubr.f32.gmra.mrb[0].mxu0 %v602
  %v883 = vpop.f32.mrb[0].mxu0
  %v884 = vadd.f32 0.0, %v883
  %v885 = vpop.f32.mrb[0].mxu0
  %v886 = vadd.f32 0.0, %v885
  %887 = vdwg.mxu0
  %v888 = vld [vmem:[%s7] sm:$0xff]
  %v889 = vld [vmem:[%s3] sm:$0xff]
  %v890 = vld [vmem:[%s4] sm:$0xff]
  %v892 = vlaneseq
  %v893 = vshrl.u32 %v892, 7
  %v894 = vsub.s32 0, %v893
  %v895 = vrot.slane %v888, %v894
  %v896 = vlaneseq
  %v897 = vshrl.u32 %v896, 7
  %v898 = vsub.s32 1, %v897
  %v899 = vrot.slane %v888, %v898
  %v900 = vlaneseq
  %v901 = vshrl.u32 %v900, 7
  %v902 = vsub.s32 2, %v901
  %v903 = vrot.slane %v888, %v902
  %v904 = vlaneseq
  %v905 = vshrl.u32 %v904, 7
  %v906 = vsub.s32 3, %v905
  %v907 = vrot.slane %v888, %v906
  %v908 = vlaneseq
  %v909 = vshrl.u32 %v908, 7
  %v910 = vsub.s32 4, %v909
  %v911 = vrot.slane %v888, %v910
  %v912 = vlaneseq
  %v913 = vshrl.u32 %v912, 7
  %v914 = vsub.s32 5, %v913
  %v915 = vrot.slane %v888, %v914
  %v916 = vlaneseq
  %v917 = vshrl.u32 %v916, 7
  %v918 = vsub.s32 6, %v917
  %v919 = vrot.slane %v888, %v918
  %v920 = vlaneseq
  %v921 = vshrl.u32 %v920, 7
  %v922 = vsub.s32 7, %v921
  %v923 = vrot.slane %v888, %v922
  %v932 = vmul.f32 %v671, %v895
  %v933 = vmul.f32 %v673, %v899
  %v934 = vmul.f32 %v742, %v903
  %v935 = vmul.f32 %v744, %v907
  %v936 = vmul.f32 %v813, %v911
  %v937 = vmul.f32 %v815, %v915
  %v938 = vmul.f32 %v884, %v919
  %v939 = vmul.f32 %v886, %v923
  %v940 = vadd.f32 %v932, %v933
  %v941 = vadd.f32 %v940, %v934
  %v942 = vadd.f32 %v941, %v935
  %v943 = vadd.f32 %v942, %v936
  %v944 = vadd.f32 %v943, %v937
  %v945 = vadd.f32 %v944, %v938
  %v946 = vsel %vm47, %v939, 0.0
  %v947 = vadd.f32 %v945, %v946
  %948 = vadd.xlane.f32.xlu0 %v947
  %v949 = vpop.xlane.xlu0 %948
  %v950 = vmul.f32 %v949, 0.0015432099
  %v951 = vsub.f32 %v671, %v950
  %v952 = vsub.f32 %v673, %v950
  %v953 = vsub.f32 %v742, %v950
  %v954 = vsub.f32 %v744, %v950
  %v955 = vsub.f32 %v813, %v950
  %v956 = vsub.f32 %v815, %v950
  %v957 = vsub.f32 %v884, %v950
  %v958 = vsub.f32 %v886, %v950
  %v959 = vmul.f32 %v951, %v895
  %v960 = vmul.f32 %v952, %v899
  %v961 = vmul.f32 %v953, %v903
  %v962 = vmul.f32 %v954, %v907
  %v963 = vmul.f32 %v955, %v911
  %v964 = vmul.f32 %v956, %v915
  %v965 = vmul.f32 %v957, %v919
  %v966 = vmul.f32 %v958, %v923
  %v967 = vmul.f32 %v959, %v959
  %v968 = vmul.f32 %v960, %v960
  %v969 = vmul.f32 %v961, %v961
  %v970 = vmul.f32 %v962, %v962
  %v971 = vmul.f32 %v963, %v963
  %v972 = vmul.f32 %v964, %v964
  %v973 = vmul.f32 %v965, %v965
  %v974 = vmul.f32 %v966, %v966
  %v975 = vadd.f32 %v967, %v968
  %v976 = vadd.f32 %v975, %v969
  %v977 = vadd.f32 %v976, %v970
  %v978 = vadd.f32 %v977, %v971
  %v979 = vadd.f32 %v978, %v972
  %v980 = vadd.f32 %v979, %v973
  %v981 = vsel %vm47, %v974, 0.0
  %v982 = vadd.f32 %v980, %v981
  %983 = vadd.xlane.f32.xlu0 %v982
  %v984 = vpop.xlane.xlu0 %983
  %v985 = vmul.f32 %v984, 0.0015432099
  %v986 = vadd.f32 %v985, 1e-05
  %v987 = vrsqrt.pop %v986
  %v988 = vmul.f32 %v959, %v987
  %v989 = vmul.f32 %v960, %v987
  %v990 = vmul.f32 %v961, %v987
  %v991 = vmul.f32 %v962, %v987
  %v992 = vmul.f32 %v963, %v987
  %v993 = vmul.f32 %v964, %v987
  %v994 = vmul.f32 %v965, %v987
  %v995 = vmul.f32 %v966, %v987
  %997 = vset.pattern.permute.xlu0 0
  %998 = vperm.xlu0 %997, %v889
  %v999 = vpop.permute.xlu0 %998
  %v1001 = vmul.f32 %v988, %v999
  %v1002 = vmul.f32 %v989, %v999
  %v1003 = vmul.f32 %v990, %v999
  %v1004 = vmul.f32 %v991, %v999
  %v1005 = vmul.f32 %v992, %v999
  %v1006 = vmul.f32 %v993, %v999
  %v1007 = vmul.f32 %v994, %v999
  %v1008 = vmul.f32 %v995, %v999
  %1010 = vset.pattern.permute.xlu0 0
  %1011 = vperm.xlu0 %1010, %v890
  %v1012 = vpop.permute.xlu0 %1011
  %v1014 = vadd.f32 %v1001, %v1012
  %v1015 = vadd.f32 %v1002, %v1012
  %v1016 = vadd.f32 %v1003, %v1012
  %v1017 = vadd.f32 %v1004, %v1012
  %v1018 = vadd.f32 %v1005, %v1012
  %v1019 = vadd.f32 %v1006, %v1012
  %v1020 = vadd.f32 %v1007, %v1012
  %v1021 = vadd.f32 %v1008, %v1012
  %v1022 = vmax.f32 %v1014, 0.0
  %v1023 = vmax.f32 %v1015, 0.0
  %v1024 = vmax.f32 %v1016, 0.0
  %v1025 = vmax.f32 %v1017, 0.0
  %v1026 = vmax.f32 %v1018, 0.0
  %v1027 = vmax.f32 %v1019, 0.0
  %v1028 = vmax.f32 %v1020, 0.0
  %v1029 = vmax.f32 %v1021, 0.0
  %v1030 = vmul.f32 %v1022, %v895
  %v1031 = vmul.f32 %v1023, %v899
  %v1032 = vmul.f32 %v1024, %v903
  %v1033 = vmul.f32 %v1025, %v907
  %v1034 = vmul.f32 %v1026, %v911
  %v1035 = vmul.f32 %v1027, %v915
  %v1036 = vmul.f32 %v1028, %v919
  %v1037 = vmul.f32 %v1029, %v923
  %1038 = vst [vmem:[#allocation3] sm:$0xff] %v1030
  %1039 = vst [vmem:[#allocation3 + $0x8] sm:$0xff] %v1031
  %1040 = vst [vmem:[#allocation3 + $0x10] sm:$0xff] %v1032
  %1041 = vst [vmem:[#allocation3 + $0x18] sm:$0xff] %v1033
  %1042 = vst [vmem:[#allocation3 + $0x20] sm:$0xff] %v1034
  %1043 = vst [vmem:[#allocation3 + $0x28] sm:$0xff] %v1035
  %1044 = vst [vmem:[#allocation3 + $0x30] sm:$0xff] %v1036
  %1045 = vst.msk [vmem:[#allocation3 + $0x38] sm:$0xff] %vm47, %v1037
  %v1046 = vld [vmem:[#allocation3] sm:$0xff]
  %v1047 = vld [vmem:[#allocation3 + $0x8] sm:$0xff]
  %v1048 = vld [vmem:[#allocation3 + $0x10] sm:$0xff]
  %v1049 = vld [vmem:[#allocation3 + $0x18] sm:$0xff]
  %v1050 = vld [vmem:[#allocation3 + $0x20] sm:$0xff]
  %v1051 = vld [vmem:[#allocation3 + $0x28] sm:$0xff]
  %v1052 = vld [vmem:[#allocation3 + $0x30] sm:$0xff]
  %v1053 = vld [vmem:[#allocation3 + $0x38] sm:$0xff]
  %1054 = vst [vmem:[#allocation2] sm:$0xff] %v1046
  %1055 = vst [vmem:[#allocation2 + $0x8] sm:$0xff] %v1047
  %1056 = vst [vmem:[#allocation2 + $0x10] sm:$0xff] %v1048
  %1057 = vst [vmem:[#allocation2 + $0x18] sm:$0xff] %v1049
  %1058 = vst [vmem:[#allocation2 + $0x20] sm:$0xff] %v1050
  %1059 = vst [vmem:[#allocation2 + $0x28] sm:$0xff] %v1051
  %1060 = vst [vmem:[#allocation2 + $0x30] sm:$0xff] %v1052
  %1061 = vst.msk [vmem:[#allocation2 + $0x38] sm:$0xff] %vm600, %v1053
  %v1062 = vld [vmem:[#allocation3] sm:$0xff]
  %v1063 = vld [vmem:[#allocation3 + $0x8] sm:$0xff]
  %v1064 = vld [vmem:[#allocation3 + $0x10] sm:$0xff]
  %v1065 = vld [vmem:[#allocation3 + $0x18] sm:$0xff]
  %v1066 = vld [vmem:[#allocation3 + $0x20] sm:$0xff]
  %v1067 = vld [vmem:[#allocation3 + $0x28] sm:$0xff]
  %v1068 = vld [vmem:[#allocation3 + $0x30] sm:$0xff]
  %v1069 = vld [vmem:[#allocation3 + $0x38] sm:$0xff]
  %1078 = vrot.lane.b32.xlu0 %v1062, 127
  %v1079 = vpop.permute.xlu0 %1078
  %1080 = vrot.lane.b32.xlu0 %v1063, 127
  %v1081 = vpop.permute.xlu0 %1080
  %1082 = vrot.lane.b32.xlu0 %v1064, 127
  %v1083 = vpop.permute.xlu0 %1082
  %1084 = vrot.lane.b32.xlu0 %v1065, 127
  %v1085 = vpop.permute.xlu0 %1084
  %1086 = vrot.lane.b32.xlu0 %v1066, 127
  %v1087 = vpop.permute.xlu0 %1086
  %1088 = vrot.lane.b32.xlu0 %v1067, 127
  %v1089 = vpop.permute.xlu0 %1088
  %1090 = vrot.lane.b32.xlu0 %v1068, 127
  %v1091 = vpop.permute.xlu0 %1090
  %1092 = vrot.lane.b32.xlu0 %v1069, 127
  %v1093 = vpop.permute.xlu0 %1092
  %v1094 = vsel %vm81, %v1079, %v1081
  %v1095 = vsel %vm81, %v1081, %v1083
  %v1096 = vsel %vm81, %v1083, %v1085
  %v1097 = vsel %vm81, %v1085, %v1087
  %v1098 = vsel %vm81, %v1087, %v1089
  %v1099 = vsel %vm81, %v1089, %v1091
  %v1100 = vsel %vm81, %v1091, %v1093
  %1109 = vst [vmem:[#allocation2 + $0x40] sm:$0xff] %v1094
  %1110 = vst [vmem:[#allocation2 + $0x48] sm:$0xff] %v1095
  %1111 = vst [vmem:[#allocation2 + $0x50] sm:$0xff] %v1096
  %1112 = vst [vmem:[#allocation2 + $0x58] sm:$0xff] %v1097
  %1113 = vst [vmem:[#allocation2 + $0x60] sm:$0xff] %v1098
  %1114 = vst [vmem:[#allocation2 + $0x68] sm:$0xff] %v1099
  %1115 = vst [vmem:[#allocation2 + $0x70] sm:$0xff] %v1100
  %1116 = vst.msk [vmem:[#allocation2 + $0x78] sm:$0xff] %vm600, %v1093
  %v1117 = vld [vmem:[#allocation3] sm:$0xff]
  %v1118 = vld [vmem:[#allocation3 + $0x8] sm:$0xff]
  %v1119 = vld [vmem:[#allocation3 + $0x10] sm:$0xff]
  %v1120 = vld [vmem:[#allocation3 + $0x18] sm:$0xff]
  %v1121 = vld [vmem:[#allocation3 + $0x20] sm:$0xff]
  %v1122 = vld [vmem:[#allocation3 + $0x28] sm:$0xff]
  %v1123 = vld [vmem:[#allocation3 + $0x30] sm:$0xff]
  %v1124 = vld [vmem:[#allocation3 + $0x38] sm:$0xff]
  %1133 = vrot.lane.b32.xlu0 %v1117, 126
  %v1134 = vpop.permute.xlu0 %1133
  %1135 = vrot.lane.b32.xlu0 %v1118, 126
  %v1136 = vpop.permute.xlu0 %1135
  %1137 = vrot.lane.b32.xlu0 %v1119, 126
  %v1138 = vpop.permute.xlu0 %1137
  %1139 = vrot.lane.b32.xlu0 %v1120, 126
  %v1140 = vpop.permute.xlu0 %1139
  %1141 = vrot.lane.b32.xlu0 %v1121, 126
  %v1142 = vpop.permute.xlu0 %1141
  %1143 = vrot.lane.b32.xlu0 %v1122, 126
  %v1144 = vpop.permute.xlu0 %1143
  %1145 = vrot.lane.b32.xlu0 %v1123, 126
  %v1146 = vpop.permute.xlu0 %1145
  %1147 = vrot.lane.b32.xlu0 %v1124, 126
  %v1148 = vpop.permute.xlu0 %1147
  %v1149 = vsel %vm137, %v1134, %v1136
  %v1150 = vsel %vm137, %v1136, %v1138
  %v1151 = vsel %vm137, %v1138, %v1140
  %v1152 = vsel %vm137, %v1140, %v1142
  %v1153 = vsel %vm137, %v1142, %v1144
  %v1154 = vsel %vm137, %v1144, %v1146
  %v1155 = vsel %vm137, %v1146, %v1148
  %1164 = vst [vmem:[#allocation2 + $0x80] sm:$0xff] %v1149
  %1165 = vst [vmem:[#allocation2 + $0x88] sm:$0xff] %v1150
  %1166 = vst [vmem:[#allocation2 + $0x90] sm:$0xff] %v1151
  %1167 = vst [vmem:[#allocation2 + $0x98] sm:$0xff] %v1152
  %1168 = vst [vmem:[#allocation2 + $0xa0] sm:$0xff] %v1153
  %1169 = vst [vmem:[#allocation2 + $0xa8] sm:$0xff] %v1154
  %1170 = vst [vmem:[#allocation2 + $0xb0] sm:$0xff] %v1155
  %1171 = vst.msk [vmem:[#allocation2 + $0xb8] sm:$0xff] %vm600, %v1148
  %v1172 = vld [vmem:[#allocation3] sm:$0xff]
  %v1173 = vld [vmem:[#allocation3 + $0x8] sm:$0xff]
  %v1174 = vld [vmem:[#allocation3 + $0x10] sm:$0xff]
  %v1175 = vld [vmem:[#allocation3 + $0x18] sm:$0xff]
  %v1176 = vld [vmem:[#allocation3 + $0x20] sm:$0xff]
  %v1177 = vld [vmem:[#allocation3 + $0x28] sm:$0xff]
  %v1178 = vld [vmem:[#allocation3 + $0x30] sm:$0xff]
  %v1179 = vld [vmem:[#allocation3 + $0x38] sm:$0xff]
  %1188 = vrot.lane.b32.xlu0 %v1172, 106
  %v1189 = vpop.permute.xlu0 %1188
  %1190 = vrot.lane.b32.xlu0 %v1173, 106
  %v1191 = vpop.permute.xlu0 %1190
  %1192 = vrot.lane.b32.xlu0 %v1174, 106
  %v1193 = vpop.permute.xlu0 %1192
  %1194 = vrot.lane.b32.xlu0 %v1175, 106
  %v1195 = vpop.permute.xlu0 %1194
  %1196 = vrot.lane.b32.xlu0 %v1176, 106
  %v1197 = vpop.permute.xlu0 %1196
  %1198 = vrot.lane.b32.xlu0 %v1177, 106
  %v1199 = vpop.permute.xlu0 %1198
  %1200 = vrot.lane.b32.xlu0 %v1178, 106
  %v1201 = vpop.permute.xlu0 %1200
  %1202 = vrot.lane.b32.xlu0 %v1179, 106
  %v1203 = vpop.permute.xlu0 %1202
  %v1204 = vsel %vm197, %v1189, %v1191
  %v1205 = vsel %vm197, %v1191, %v1193
  %v1206 = vsel %vm197, %v1193, %v1195
  %v1207 = vsel %vm197, %v1195, %v1197
  %v1208 = vsel %vm197, %v1197, %v1199
  %v1209 = vsel %vm197, %v1199, %v1201
  %v1210 = vsel %vm197, %v1201, %v1203
  %1219 = vst [vmem:[#allocation2 + $0xc0] sm:$0xff] %v1204
  %1220 = vst [vmem:[#allocation2 + $0xc8] sm:$0xff] %v1205
  %1221 = vst [vmem:[#allocation2 + $0xd0] sm:$0xff] %v1206
  %1222 = vst [vmem:[#allocation2 + $0xd8] sm:$0xff] %v1207
  %1223 = vst [vmem:[#allocation2 + $0xe0] sm:$0xff] %v1208
  %1224 = vst [vmem:[#allocation2 + $0xe8] sm:$0xff] %v1209
  %1225 = vst [vmem:[#allocation2 + $0xf0] sm:$0xff] %v1210
  %1226 = vst.msk [vmem:[#allocation2 + $0xf8] sm:$0xff] %vm600, %v1203
  %v1227 = vld [vmem:[#allocation3] sm:$0xff]
  %v1228 = vld [vmem:[#allocation3 + $0x8] sm:$0xff]
  %v1229 = vld [vmem:[#allocation3 + $0x10] sm:$0xff]
  %v1230 = vld [vmem:[#allocation3 + $0x18] sm:$0xff]
  %v1231 = vld [vmem:[#allocation3 + $0x20] sm:$0xff]
  %v1232 = vld [vmem:[#allocation3 + $0x28] sm:$0xff]
  %v1233 = vld [vmem:[#allocation3 + $0x30] sm:$0xff]
  %v1234 = vld [vmem:[#allocation3 + $0x38] sm:$0xff]
  %1243 = vrot.lane.b32.xlu0 %v1227, 105
  %v1244 = vpop.permute.xlu0 %1243
  %1245 = vrot.lane.b32.xlu0 %v1228, 105
  %v1246 = vpop.permute.xlu0 %1245
  %1247 = vrot.lane.b32.xlu0 %v1229, 105
  %v1248 = vpop.permute.xlu0 %1247
  %1249 = vrot.lane.b32.xlu0 %v1230, 105
  %v1250 = vpop.permute.xlu0 %1249
  %1251 = vrot.lane.b32.xlu0 %v1231, 105
  %v1252 = vpop.permute.xlu0 %1251
  %1253 = vrot.lane.b32.xlu0 %v1232, 105
  %v1254 = vpop.permute.xlu0 %1253
  %1255 = vrot.lane.b32.xlu0 %v1233, 105
  %v1256 = vpop.permute.xlu0 %1255
  %1257 = vrot.lane.b32.xlu0 %v1234, 105
  %v1258 = vpop.permute.xlu0 %1257
  %v1259 = vsel %vm258, %v1244, %v1246
  %v1260 = vsel %vm258, %v1246, %v1248
  %v1261 = vsel %vm258, %v1248, %v1250
  %v1262 = vsel %vm258, %v1250, %v1252
  %v1263 = vsel %vm258, %v1252, %v1254
  %v1264 = vsel %vm258, %v1254, %v1256
  %v1265 = vsel %vm258, %v1256, %v1258
  %1274 = vst [vmem:[#allocation2 + $0x100] sm:$0xff] %v1259
  %1275 = vst [vmem:[#allocation2 + $0x108] sm:$0xff] %v1260
  %1276 = vst [vmem:[#allocation2 + $0x110] sm:$0xff] %v1261
  %1277 = vst [vmem:[#allocation2 + $0x118] sm:$0xff] %v1262
  %1278 = vst [vmem:[#allocation2 + $0x120] sm:$0xff] %v1263
  %1279 = vst [vmem:[#allocation2 + $0x128] sm:$0xff] %v1264
  %1280 = vst [vmem:[#allocation2 + $0x130] sm:$0xff] %v1265
  %1281 = vst.msk [vmem:[#allocation2 + $0x138] sm:$0xff] %vm600, %v1258
  %v1282 = vld [vmem:[#allocation3] sm:$0xff]
  %v1283 = vld [vmem:[#allocation3 + $0x8] sm:$0xff]
  %v1284 = vld [vmem:[#allocation3 + $0x10] sm:$0xff]
  %v1285 = vld [vmem:[#allocation3 + $0x18] sm:$0xff]
  %v1286 = vld [vmem:[#allocation3 + $0x20] sm:$0xff]
  %v1287 = vld [vmem:[#allocation3 + $0x28] sm:$0xff]
  %v1288 = vld [vmem:[#allocation3 + $0x30] sm:$0xff]
  %v1289 = vld [vmem:[#allocation3 + $0x38] sm:$0xff]
  %1298 = vrot.lane.b32.xlu0 %v1282, 104
  %v1299 = vpop.permute.xlu0 %1298
  %1300 = vrot.lane.b32.xlu0 %v1283, 104
  %v1301 = vpop.permute.xlu0 %1300
  %1302 = vrot.lane.b32.xlu0 %v1284, 104
  %v1303 = vpop.permute.xlu0 %1302
  %1304 = vrot.lane.b32.xlu0 %v1285, 104
  %v1305 = vpop.permute.xlu0 %1304
  %1306 = vrot.lane.b32.xlu0 %v1286, 104
  %v1307 = vpop.permute.xlu0 %1306
  %1308 = vrot.lane.b32.xlu0 %v1287, 104
  %v1309 = vpop.permute.xlu0 %1308
  %1310 = vrot.lane.b32.xlu0 %v1288, 104
  %v1311 = vpop.permute.xlu0 %1310
  %1312 = vrot.lane.b32.xlu0 %v1289, 104
  %v1313 = vpop.permute.xlu0 %1312
  %v1314 = vsel %vm319, %v1299, %v1301
  %v1315 = vsel %vm319, %v1301, %v1303
  %v1316 = vsel %vm319, %v1303, %v1305
  %v1317 = vsel %vm319, %v1305, %v1307
  %v1318 = vsel %vm319, %v1307, %v1309
  %v1319 = vsel %vm319, %v1309, %v1311
  %v1320 = vsel %vm319, %v1311, %v1313
  %1329 = vst [vmem:[#allocation2 + $0x140] sm:$0xff] %v1314
  %1330 = vst [vmem:[#allocation2 + $0x148] sm:$0xff] %v1315
  %1331 = vst [vmem:[#allocation2 + $0x150] sm:$0xff] %v1316
  %1332 = vst [vmem:[#allocation2 + $0x158] sm:$0xff] %v1317
  %1333 = vst [vmem:[#allocation2 + $0x160] sm:$0xff] %v1318
  %1334 = vst [vmem:[#allocation2 + $0x168] sm:$0xff] %v1319
  %1335 = vst [vmem:[#allocation2 + $0x170] sm:$0xff] %v1320
  %1336 = vst.msk [vmem:[#allocation2 + $0x178] sm:$0xff] %vm600, %v1313
  %v1337 = vld [vmem:[#allocation3] sm:$0xff]
  %v1338 = vld [vmem:[#allocation3 + $0x8] sm:$0xff]
  %v1339 = vld [vmem:[#allocation3 + $0x10] sm:$0xff]
  %v1340 = vld [vmem:[#allocation3 + $0x18] sm:$0xff]
  %v1341 = vld [vmem:[#allocation3 + $0x20] sm:$0xff]
  %v1342 = vld [vmem:[#allocation3 + $0x28] sm:$0xff]
  %v1343 = vld [vmem:[#allocation3 + $0x30] sm:$0xff]
  %v1344 = vld [vmem:[#allocation3 + $0x38] sm:$0xff]
  %1353 = vrot.lane.b32.xlu0 %v1337, 84
  %v1354 = vpop.permute.xlu0 %1353
  %1355 = vrot.lane.b32.xlu0 %v1338, 84
  %v1356 = vpop.permute.xlu0 %1355
  %1357 = vrot.lane.b32.xlu0 %v1339, 84
  %v1358 = vpop.permute.xlu0 %1357
  %1359 = vrot.lane.b32.xlu0 %v1340, 84
  %v1360 = vpop.permute.xlu0 %1359
  %1361 = vrot.lane.b32.xlu0 %v1341, 84
  %v1362 = vpop.permute.xlu0 %1361
  %1363 = vrot.lane.b32.xlu0 %v1342, 84
  %v1364 = vpop.permute.xlu0 %1363
  %1365 = vrot.lane.b32.xlu0 %v1343, 84
  %v1366 = vpop.permute.xlu0 %1365
  %1367 = vrot.lane.b32.xlu0 %v1344, 84
  %v1368 = vpop.permute.xlu0 %1367
  %v1369 = vsel %vm380, %v1354, %v1356
  %v1370 = vsel %vm380, %v1356, %v1358
  %v1371 = vsel %vm380, %v1358, %v1360
  %v1372 = vsel %vm380, %v1360, %v1362
  %v1373 = vsel %vm380, %v1362, %v1364
  %v1374 = vsel %vm380, %v1364, %v1366
  %v1375 = vsel %vm380, %v1366, %v1368
  %1384 = vst [vmem:[#allocation2 + $0x180] sm:$0xff] %v1369
  %1385 = vst [vmem:[#allocation2 + $0x188] sm:$0xff] %v1370
  %1386 = vst [vmem:[#allocation2 + $0x190] sm:$0xff] %v1371
  %1387 = vst [vmem:[#allocation2 + $0x198] sm:$0xff] %v1372
  %1388 = vst [vmem:[#allocation2 + $0x1a0] sm:$0xff] %v1373
  %1389 = vst [vmem:[#allocation2 + $0x1a8] sm:$0xff] %v1374
  %1390 = vst [vmem:[#allocation2 + $0x1b0] sm:$0xff] %v1375
  %1391 = vst.msk [vmem:[#allocation2 + $0x1b8] sm:$0xff] %vm600, %v1368
  %v1392 = vld [vmem:[#allocation3] sm:$0xff]
  %v1393 = vld [vmem:[#allocation3 + $0x8] sm:$0xff]
  %v1394 = vld [vmem:[#allocation3 + $0x10] sm:$0xff]
  %v1395 = vld [vmem:[#allocation3 + $0x18] sm:$0xff]
  %v1396 = vld [vmem:[#allocation3 + $0x20] sm:$0xff]
  %v1397 = vld [vmem:[#allocation3 + $0x28] sm:$0xff]
  %v1398 = vld [vmem:[#allocation3 + $0x30] sm:$0xff]
  %v1399 = vld [vmem:[#allocation3 + $0x38] sm:$0xff]
  %1408 = vrot.lane.b32.xlu0 %v1392, 83
  %v1409 = vpop.permute.xlu0 %1408
  %1410 = vrot.lane.b32.xlu0 %v1393, 83
  %v1411 = vpop.permute.xlu0 %1410
  %1412 = vrot.lane.b32.xlu0 %v1394, 83
  %v1413 = vpop.permute.xlu0 %1412
  %1414 = vrot.lane.b32.xlu0 %v1395, 83
  %v1415 = vpop.permute.xlu0 %1414
  %1416 = vrot.lane.b32.xlu0 %v1396, 83
  %v1417 = vpop.permute.xlu0 %1416
  %1418 = vrot.lane.b32.xlu0 %v1397, 83
  %v1419 = vpop.permute.xlu0 %1418
  %1420 = vrot.lane.b32.xlu0 %v1398, 83
  %v1421 = vpop.permute.xlu0 %1420
  %1422 = vrot.lane.b32.xlu0 %v1399, 83
  %v1423 = vpop.permute.xlu0 %1422
  %v1424 = vsel %vm441, %v1409, %v1411
  %v1425 = vsel %vm441, %v1411, %v1413
  %v1426 = vsel %vm441, %v1413, %v1415
  %v1427 = vsel %vm441, %v1415, %v1417
  %v1428 = vsel %vm441, %v1417, %v1419
  %v1429 = vsel %vm441, %v1419, %v1421
  %v1430 = vsel %vm441, %v1421, %v1423
  %1439 = vst [vmem:[#allocation2 + $0x1c0] sm:$0xff] %v1424
  %1440 = vst [vmem:[#allocation2 + $0x1c8] sm:$0xff] %v1425
  %1441 = vst [vmem:[#allocation2 + $0x1d0] sm:$0xff] %v1426
  %1442 = vst [vmem:[#allocation2 + $0x1d8] sm:$0xff] %v1427
  %1443 = vst [vmem:[#allocation2 + $0x1e0] sm:$0xff] %v1428
  %1444 = vst [vmem:[#allocation2 + $0x1e8] sm:$0xff] %v1429
  %1445 = vst [vmem:[#allocation2 + $0x1f0] sm:$0xff] %v1430
  %1446 = vst.msk [vmem:[#allocation2 + $0x1f8] sm:$0xff] %vm600, %v1423
  %v1447 = vld [vmem:[#allocation3] sm:$0xff]
  %v1448 = vld [vmem:[#allocation3 + $0x8] sm:$0xff]
  %v1449 = vld [vmem:[#allocation3 + $0x10] sm:$0xff]
  %v1450 = vld [vmem:[#allocation3 + $0x18] sm:$0xff]
  %v1451 = vld [vmem:[#allocation3 + $0x20] sm:$0xff]
  %v1452 = vld [vmem:[#allocation3 + $0x28] sm:$0xff]
  %v1453 = vld [vmem:[#allocation3 + $0x30] sm:$0xff]
  %v1454 = vld [vmem:[#allocation3 + $0x38] sm:$0xff]
  %1463 = vrot.lane.b32.xlu0 %v1447, 82
  %v1464 = vpop.permute.xlu0 %1463
  %1465 = vrot.lane.b32.xlu0 %v1448, 82
  %v1466 = vpop.permute.xlu0 %1465
  %1467 = vrot.lane.b32.xlu0 %v1449, 82
  %v1468 = vpop.permute.xlu0 %1467
  %1469 = vrot.lane.b32.xlu0 %v1450, 82
  %v1470 = vpop.permute.xlu0 %1469
  %1471 = vrot.lane.b32.xlu0 %v1451, 82
  %v1472 = vpop.permute.xlu0 %1471
  %1473 = vrot.lane.b32.xlu0 %v1452, 82
  %v1474 = vpop.permute.xlu0 %1473
  %1475 = vrot.lane.b32.xlu0 %v1453, 82
  %v1476 = vpop.permute.xlu0 %1475
  %1477 = vrot.lane.b32.xlu0 %v1454, 82
  %v1478 = vpop.permute.xlu0 %1477
  %v1479 = vsel %vm502, %v1464, %v1466
  %v1480 = vsel %vm502, %v1466, %v1468
  %v1481 = vsel %vm502, %v1468, %v1470
  %v1482 = vsel %vm502, %v1470, %v1472
  %v1483 = vsel %vm502, %v1472, %v1474
  %v1484 = vsel %vm502, %v1474, %v1476
  %v1485 = vsel %vm502, %v1476, %v1478
  %1494 = vst [vmem:[#allocation2 + $0x200] sm:$0xff] %v1479
  %1495 = vst [vmem:[#allocation2 + $0x208] sm:$0xff] %v1480
  %1496 = vst [vmem:[#allocation2 + $0x210] sm:$0xff] %v1481
  %1497 = vst [vmem:[#allocation2 + $0x218] sm:$0xff] %v1482
  %1498 = vst [vmem:[#allocation2 + $0x220] sm:$0xff] %v1483
  %1499 = vst [vmem:[#allocation2 + $0x228] sm:$0xff] %v1484
  %1500 = vst [vmem:[#allocation2 + $0x230] sm:$0xff] %v1485
  %1501 = vst.msk [vmem:[#allocation2 + $0x238] sm:$0xff] %vm600, %v1478
  %v1502 = vld [vmem:[%s2] sm:$0xff]
  %v1503 = vld [vmem:[#allocation2] sm:$0xff]
  %v1504 = vld [vmem:[#allocation2 + $0x8] sm:$0xff]
  %v1505 = vld [vmem:[#allocation2 + $0x10] sm:$0xff]
  %v1506 = vld [vmem:[#allocation2 + $0x18] sm:$0xff]
  %v1507 = vld [vmem:[#allocation2 + $0x20] sm:$0xff]
  %v1508 = vld [vmem:[#allocation2 + $0x28] sm:$0xff]
  %v1509 = vld [vmem:[#allocation2 + $0x30] sm:$0xff]
  %v1510 = vld [vmem:[#allocation2 + $0x38] sm:$0xff]
  %v1511 = vld [vmem:[#allocation2 + $0x40] sm:$0xff]
  %v1512 = vld [vmem:[#allocation2 + $0x48] sm:$0xff]
  %v1513 = vld [vmem:[#allocation2 + $0x50] sm:$0xff]
  %v1514 = vld [vmem:[#allocation2 + $0x58] sm:$0xff]
  %v1515 = vld [vmem:[#allocation2 + $0x60] sm:$0xff]
  %v1516 = vld [vmem:[#allocation2 + $0x68] sm:$0xff]
  %v1517 = vld [vmem:[#allocation2 + $0x70] sm:$0xff]
  %v1518 = vld [vmem:[#allocation2 + $0x78] sm:$0xff]
  %v1519 = vld [vmem:[#allocation2 + $0x80] sm:$0xff]
  %v1520 = vld [vmem:[#allocation2 + $0x88] sm:$0xff]
  %v1521 = vld [vmem:[#allocation2 + $0x90] sm:$0xff]
  %v1522 = vld [vmem:[#allocation2 + $0x98] sm:$0xff]
  %v1523 = vld [vmem:[#allocation2 + $0xa0] sm:$0xff]
  %v1524 = vld [vmem:[#allocation2 + $0xa8] sm:$0xff]
  %v1525 = vld [vmem:[#allocation2 + $0xb0] sm:$0xff]
  %v1526 = vld [vmem:[#allocation2 + $0xb8] sm:$0xff]
  %v1527 = vld [vmem:[#allocation2 + $0xc0] sm:$0xff]
  %v1528 = vld [vmem:[#allocation2 + $0xc8] sm:$0xff]
  %v1529 = vld [vmem:[#allocation2 + $0xd0] sm:$0xff]
  %v1530 = vld [vmem:[#allocation2 + $0xd8] sm:$0xff]
  %v1531 = vld [vmem:[#allocation2 + $0xe0] sm:$0xff]
  %v1532 = vld [vmem:[#allocation2 + $0xe8] sm:$0xff]
  %v1533 = vld [vmem:[#allocation2 + $0xf0] sm:$0xff]
  %v1534 = vld [vmem:[#allocation2 + $0xf8] sm:$0xff]
  %v1535 = vld [vmem:[#allocation2 + $0x100] sm:$0xff]
  %v1536 = vld [vmem:[#allocation2 + $0x108] sm:$0xff]
  %v1537 = vld [vmem:[#allocation2 + $0x110] sm:$0xff]
  %v1538 = vld [vmem:[#allocation2 + $0x118] sm:$0xff]
  %v1539 = vld [vmem:[#allocation2 + $0x120] sm:$0xff]
  %v1540 = vld [vmem:[#allocation2 + $0x128] sm:$0xff]
  %v1541 = vld [vmem:[#allocation2 + $0x130] sm:$0xff]
  %v1542 = vld [vmem:[#allocation2 + $0x138] sm:$0xff]
  %v1543 = vld [vmem:[#allocation2 + $0x140] sm:$0xff]
  %v1544 = vld [vmem:[#allocation2 + $0x148] sm:$0xff]
  %v1545 = vld [vmem:[#allocation2 + $0x150] sm:$0xff]
  %v1546 = vld [vmem:[#allocation2 + $0x158] sm:$0xff]
  %v1547 = vld [vmem:[#allocation2 + $0x160] sm:$0xff]
  %v1548 = vld [vmem:[#allocation2 + $0x168] sm:$0xff]
  %v1549 = vld [vmem:[#allocation2 + $0x170] sm:$0xff]
  %v1550 = vld [vmem:[#allocation2 + $0x178] sm:$0xff]
  %v1551 = vld [vmem:[#allocation2 + $0x180] sm:$0xff]
  %v1552 = vld [vmem:[#allocation2 + $0x188] sm:$0xff]
  %v1553 = vld [vmem:[#allocation2 + $0x190] sm:$0xff]
  %v1554 = vld [vmem:[#allocation2 + $0x198] sm:$0xff]
  %v1555 = vld [vmem:[#allocation2 + $0x1a0] sm:$0xff]
  %v1556 = vld [vmem:[#allocation2 + $0x1a8] sm:$0xff]
  %v1557 = vld [vmem:[#allocation2 + $0x1b0] sm:$0xff]
  %v1558 = vld [vmem:[#allocation2 + $0x1b8] sm:$0xff]
  %v1559 = vld [vmem:[#allocation2 + $0x1c0] sm:$0xff]
  %v1560 = vld [vmem:[#allocation2 + $0x1c8] sm:$0xff]
  %v1561 = vld [vmem:[#allocation2 + $0x1d0] sm:$0xff]
  %v1562 = vld [vmem:[#allocation2 + $0x1d8] sm:$0xff]
  %v1563 = vld [vmem:[#allocation2 + $0x1e0] sm:$0xff]
  %v1564 = vld [vmem:[#allocation2 + $0x1e8] sm:$0xff]
  %v1565 = vld [vmem:[#allocation2 + $0x1f0] sm:$0xff]
  %v1566 = vld [vmem:[#allocation2 + $0x1f8] sm:$0xff]
  %v1567 = vld [vmem:[#allocation2 + $0x200] sm:$0xff]
  %v1568 = vld [vmem:[#allocation2 + $0x208] sm:$0xff]
  %v1569 = vld [vmem:[#allocation2 + $0x210] sm:$0xff]
  %v1570 = vld [vmem:[#allocation2 + $0x218] sm:$0xff]
  %v1571 = vld [vmem:[#allocation2 + $0x220] sm:$0xff]
  %v1572 = vld [vmem:[#allocation2 + $0x228] sm:$0xff]
  %v1573 = vld [vmem:[#allocation2 + $0x230] sm:$0xff]
  %v1574 = vld [vmem:[#allocation2 + $0x238] sm:$0xff]
  %v1576 = vsel %vm600, %v1502, 0
  %1578 = vmatprep.subr.mxu0 %v1504
  %1579 = vmatpush1.msra.mxu0 %v1503
  %1580 = vmatprep.subr.mxu0 %v1512
  %1581 = vmatpush1.msra.mxu0 %v1511
  %1582 = vmatprep.subr.mxu0 %v1520
  %1583 = vmatpush1.msra.mxu0 %v1519
  %1584 = vmatprep.subr.mxu0 %v1528
  %1585 = vmatpush1.msra.mxu0 %v1527
  %1586 = vmatprep.subr.mxu0 %v1536
  %1587 = vmatpush1.msra.mxu0 %v1535
  %1588 = vmatprep.subr.mxu0 %v1544
  %1589 = vmatpush1.msra.mxu0 %v1543
  %1590 = vmatprep.subr.mxu0 %v1552
  %1591 = vmatpush1.msra.mxu0 %v1551
  %1592 = vmatprep.subr.mxu0 %v1560
  %1593 = vmatpush1.msra.mxu0 %v1559
  %1594 = vmatprep.subr.mxu0 %v1568
  %1595 = vmatpush1.msra.mxu0 %v1567
  %1596 = vmatprep.subr.mxu0 0.0
  %1597 = vmatpush1.msra.mxu0 0.0
  %1598 = vmatprep.subr.mxu0 0.0
  %1599 = vmatpush1.msra.mxu0 0.0
  %1600 = vmatprep.subr.mxu0 0.0
  %1601 = vmatpush1.msra.mxu0 0.0
  %1602 = vmatprep.subr.mxu0 0.0
  %1603 = vmatpush1.msra.mxu0 0.0
  %1604 = vmatprep.subr.mxu0 0.0
  %1605 = vmatpush1.msra.mxu0 0.0
  %1606 = vmatprep.subr.mxu0 0.0
  %1607 = vmatpush1.msra.mxu0 0.0
  %1608 = vmatprep.subr.mxu0 0.0
  %1609 = vmatpush1.msra.mxu0 0.0
  %1610 = vmatprep.subr.mxu0 0.0
  %1611 = vmatpush1.msra.mxu0 0.0
  %1612 = vmatprep.subr.mxu0 0.0
  %1613 = vmatpush1.msra.mxu0 0.0
  %1614 = vmatprep.subr.mxu0 0.0
  %1615 = vmatpush1.msra.mxu0 0.0
  %1616 = vmatprep.subr.mxu0 0.0
  %1617 = vmatpush1.msra.mxu0 0.0
  %1618 = vmatprep.subr.mxu0 0.0
  %1619 = vmatpush1.msra.mxu0 0.0
  %1620 = vmatprep.subr.mxu0 0.0
  %1621 = vmatpush1.msra.mxu0 0.0
  %1622 = vmatprep.subr.mxu0 0.0
  %1623 = vmatpush1.msra.mxu0 0.0
  %1624 = vmatprep.subr.mxu0 0.0
  %1625 = vmatpush1.msra.mxu0 0.0
  %1626 = vmatprep.subr.mxu0 0.0
  %1627 = vmatpush1.msra.mxu0 0.0
  %1628 = vmatprep.subr.mxu0 0.0
  %1629 = vmatpush1.msra.mxu0 0.0
  %1630 = vmatprep.subr.mxu0 0.0
  %1631 = vmatpush1.msra.mxu0 0.0
  %1632 = vmatprep.subr.mxu0 0.0
  %1633 = vmatpush1.msra.mxu0 0.0
  %1634 = vmatprep.subr.mxu0 0.0
  %1635 = vmatpush1.msra.mxu0 0.0
  %1636 = vmatprep.subr.mxu0 0.0
  %1637 = vmatpush1.msra.mxu0 0.0
  %1638 = vmatprep.subr.mxu0 0.0
  %1639 = vmatpush1.msra.mxu0 0.0
  %1640 = vmatprep.subr.mxu0 0.0
  %1641 = vmatpush1.msra.mxu0 0.0
  %1642 = vmatprep.mubr.f32.mxu0 0.0
  %1643 = vmatmul.mubr.f32.gmra.mrb[0].mxu0 %v1576
  %v1644 = vpop.f32.mrb[0].mxu0
  %v1645 = vadd.f32 0.0, %v1644
  %v1646 = vpop.f32.mrb[0].mxu0
  %v1647 = vadd.f32 0.0, %v1646
  %1648 = vdwg.mxu0
  %1649 = vmatprep.subr.mxu0 %v1506
  %1650 = vmatpush1.msra.mxu0 %v1505
  %1651 = vmatprep.subr.mxu0 %v1514
  %1652 = vmatpush1.msra.mxu0 %v1513
  %1653 = vmatprep.subr.mxu0 %v1522
  %1654 = vmatpush1.msra.mxu0 %v1521
  %1655 = vmatprep.subr.mxu0 %v1530
  %1656 = vmatpush1.msra.mxu0 %v1529
  %1657 = vmatprep.subr.mxu0 %v1538
  %1658 = vmatpush1.msra.mxu0 %v1537
  %1659 = vmatprep.subr.mxu0 %v1546
  %1660 = vmatpush1.msra.mxu0 %v1545
  %1661 = vmatprep.subr.mxu0 %v1554
  %1662 = vmatpush1.msra.mxu0 %v1553
  %1663 = vmatprep.subr.mxu0 %v1562
  %1664 = vmatpush1.msra.mxu0 %v1561
  %1665 = vmatprep.subr.mxu0 %v1570
  %1666 = vmatpush1.msra.mxu0 %v1569
  %1667 = vmatprep.subr.mxu0 0.0
  %1668 = vmatpush1.msra.mxu0 0.0
  %1669 = vmatprep.subr.mxu0 0.0
  %1670 = vmatpush1.msra.mxu0 0.0
  %1671 = vmatprep.subr.mxu0 0.0
  %1672 = vmatpush1.msra.mxu0 0.0
  %1673 = vmatprep.subr.mxu0 0.0
  %1674 = vmatpush1.msra.mxu0 0.0
  %1675 = vmatprep.subr.mxu0 0.0
  %1676 = vmatpush1.msra.mxu0 0.0
  %1677 = vmatprep.subr.mxu0 0.0
  %1678 = vmatpush1.msra.mxu0 0.0
  %1679 = vmatprep.subr.mxu0 0.0
  %1680 = vmatpush1.msra.mxu0 0.0
  %1681 = vmatprep.subr.mxu0 0.0
  %1682 = vmatpush1.msra.mxu0 0.0
  %1683 = vmatprep.subr.mxu0 0.0
  %1684 = vmatpush1.msra.mxu0 0.0
  %1685 = vmatprep.subr.mxu0 0.0
  %1686 = vmatpush1.msra.mxu0 0.0
  %1687 = vmatprep.subr.mxu0 0.0
  %1688 = vmatpush1.msra.mxu0 0.0
  %1689 = vmatprep.subr.mxu0 0.0
  %1690 = vmatpush1.msra.mxu0 0.0
  %1691 = vmatprep.subr.mxu0 0.0
  %1692 = vmatpush1.msra.mxu0 0.0
  %1693 = vmatprep.subr.mxu0 0.0
  %1694 = vmatpush1.msra.mxu0 0.0
  %1695 = vmatprep.subr.mxu0 0.0
  %1696 = vmatpush1.msra.mxu0 0.0
  %1697 = vmatprep.subr.mxu0 0.0
  %1698 = vmatpush1.msra.mxu0 0.0
  %1699 = vmatprep.subr.mxu0 0.0
  %1700 = vmatpush1.msra.mxu0 0.0
  %1701 = vmatprep.subr.mxu0 0.0
  %1702 = vmatpush1.msra.mxu0 0.0
  %1703 = vmatprep.subr.mxu0 0.0
  %1704 = vmatpush1.msra.mxu0 0.0
  %1705 = vmatprep.subr.mxu0 0.0
  %1706 = vmatpush1.msra.mxu0 0.0
  %1707 = vmatprep.subr.mxu0 0.0
  %1708 = vmatpush1.msra.mxu0 0.0
  %1709 = vmatprep.subr.mxu0 0.0
  %1710 = vmatpush1.msra.mxu0 0.0
  %1711 = vmatprep.subr.mxu0 0.0
  %1712 = vmatpush1.msra.mxu0 0.0
  %1713 = vmatprep.mubr.f32.mxu0 0.0
  %1714 = vmatmul.mubr.f32.gmra.mrb[0].mxu0 %v1576
  %v1715 = vpop.f32.mrb[0].mxu0
  %v1716 = vadd.f32 0.0, %v1715
  %v1717 = vpop.f32.mrb[0].mxu0
  %v1718 = vadd.f32 0.0, %v1717
  %1719 = vdwg.mxu0
  %1720 = vmatprep.subr.mxu0 %v1508
  %1721 = vmatpush1.msra.mxu0 %v1507
  %1722 = vmatprep.subr.mxu0 %v1516
  %1723 = vmatpush1.msra.mxu0 %v1515
  %1724 = vmatprep.subr.mxu0 %v1524
  %1725 = vmatpush1.msra.mxu0 %v1523
  %1726 = vmatprep.subr.mxu0 %v1532
  %1727 = vmatpush1.msra.mxu0 %v1531
  %1728 = vmatprep.subr.mxu0 %v1540
  %1729 = vmatpush1.msra.mxu0 %v1539
  %1730 = vmatprep.subr.mxu0 %v1548
  %1731 = vmatpush1.msra.mxu0 %v1547
  %1732 = vmatprep.subr.mxu0 %v1556
  %1733 = vmatpush1.msra.mxu0 %v1555
  %1734 = vmatprep.subr.mxu0 %v1564
  %1735 = vmatpush1.msra.mxu0 %v1563
  %1736 = vmatprep.subr.mxu0 %v1572
  %1737 = vmatpush1.msra.mxu0 %v1571
  %1738 = vmatprep.subr.mxu0 0.0
  %1739 = vmatpush1.msra.mxu0 0.0
  %1740 = vmatprep.subr.mxu0 0.0
  %1741 = vmatpush1.msra.mxu0 0.0
  %1742 = vmatprep.subr.mxu0 0.0
  %1743 = vmatpush1.msra.mxu0 0.0
  %1744 = vmatprep.subr.mxu0 0.0
  %1745 = vmatpush1.msra.mxu0 0.0
  %1746 = vmatprep.subr.mxu0 0.0
  %1747 = vmatpush1.msra.mxu0 0.0
  %1748 = vmatprep.subr.mxu0 0.0
  %1749 = vmatpush1.msra.mxu0 0.0
  %1750 = vmatprep.subr.mxu0 0.0
  %1751 = vmatpush1.msra.mxu0 0.0
  %1752 = vmatprep.subr.mxu0 0.0
  %1753 = vmatpush1.msra.mxu0 0.0
  %1754 = vmatprep.subr.mxu0 0.0
  %1755 = vmatpush1.msra.mxu0 0.0
  %1756 = vmatprep.subr.mxu0 0.0
  %1757 = vmatpush1.msra.mxu0 0.0
  %1758 = vmatprep.subr.mxu0 0.0
  %1759 = vmatpush1.msra.mxu0 0.0
  %1760 = vmatprep.subr.mxu0 0.0
  %1761 = vmatpush1.msra.mxu0 0.0
  %1762 = vmatprep.subr.mxu0 0.0
  %1763 = vmatpush1.msra.mxu0 0.0
  %1764 = vmatprep.subr.mxu0 0.0
  %1765 = vmatpush1.msra.mxu0 0.0
  %1766 = vmatprep.subr.mxu0 0.0
  %1767 = vmatpush1.msra.mxu0 0.0
  %1768 = vmatprep.subr.mxu0 0.0
  %1769 = vmatpush1.msra.mxu0 0.0
  %1770 = vmatprep.subr.mxu0 0.0
  %1771 = vmatpush1.msra.mxu0 0.0
  %1772 = vmatprep.subr.mxu0 0.0
  %1773 = vmatpush1.msra.mxu0 0.0
  %1774 = vmatprep.subr.mxu0 0.0
  %1775 = vmatpush1.msra.mxu0 0.0
  %1776 = vmatprep.subr.mxu0 0.0
  %1777 = vmatpush1.msra.mxu0 0.0
  %1778 = vmatprep.subr.mxu0 0.0
  %1779 = vmatpush1.msra.mxu0 0.0
  %1780 = vmatprep.subr.mxu0 0.0
  %1781 = vmatpush1.msra.mxu0 0.0
  %1782 = vmatprep.subr.mxu0 0.0
  %1783 = vmatpush1.msra.mxu0 0.0
  %1784 = vmatprep.mubr.f32.mxu0 0.0
  %1785 = vmatmul.mubr.f32.gmra.mrb[0].mxu0 %v1576
  %v1786 = vpop.f32.mrb[0].mxu0
  %v1787 = vadd.f32 0.0, %v1786
  %v1788 = vpop.f32.mrb[0].mxu0
  %v1789 = vadd.f32 0.0, %v1788
  %1790 = vdwg.mxu0
  %1791 = vmatprep.subr.mxu0 %v1510
  %1792 = vmatpush1.msra.mxu0 %v1509
  %1793 = vmatprep.subr.mxu0 %v1518
  %1794 = vmatpush1.msra.mxu0 %v1517
  %1795 = vmatprep.subr.mxu0 %v1526
  %1796 = vmatpush1.msra.mxu0 %v1525
  %1797 = vmatprep.subr.mxu0 %v1534
  %1798 = vmatpush1.msra.mxu0 %v1533
  %1799 = vmatprep.subr.mxu0 %v1542
  %1800 = vmatpush1.msra.mxu0 %v1541
  %1801 = vmatprep.subr.mxu0 %v1550
  %1802 = vmatpush1.msra.mxu0 %v1549
  %1803 = vmatprep.subr.mxu0 %v1558
  %1804 = vmatpush1.msra.mxu0 %v1557
  %1805 = vmatprep.subr.mxu0 %v1566
  %1806 = vmatpush1.msra.mxu0 %v1565
  %1807 = vmatprep.subr.mxu0 %v1574
  %1808 = vmatpush1.msra.mxu0 %v1573
  %1809 = vmatprep.subr.mxu0 0.0
  %1810 = vmatpush1.msra.mxu0 0.0
  %1811 = vmatprep.subr.mxu0 0.0
  %1812 = vmatpush1.msra.mxu0 0.0
  %1813 = vmatprep.subr.mxu0 0.0
  %1814 = vmatpush1.msra.mxu0 0.0
  %1815 = vmatprep.subr.mxu0 0.0
  %1816 = vmatpush1.msra.mxu0 0.0
  %1817 = vmatprep.subr.mxu0 0.0
  %1818 = vmatpush1.msra.mxu0 0.0
  %1819 = vmatprep.subr.mxu0 0.0
  %1820 = vmatpush1.msra.mxu0 0.0
  %1821 = vmatprep.subr.mxu0 0.0
  %1822 = vmatpush1.msra.mxu0 0.0
  %1823 = vmatprep.subr.mxu0 0.0
  %1824 = vmatpush1.msra.mxu0 0.0
  %1825 = vmatprep.subr.mxu0 0.0
  %1826 = vmatpush1.msra.mxu0 0.0
  %1827 = vmatprep.subr.mxu0 0.0
  %1828 = vmatpush1.msra.mxu0 0.0
  %1829 = vmatprep.subr.mxu0 0.0
  %1830 = vmatpush1.msra.mxu0 0.0
  %1831 = vmatprep.subr.mxu0 0.0
  %1832 = vmatpush1.msra.mxu0 0.0
  %1833 = vmatprep.subr.mxu0 0.0
  %1834 = vmatpush1.msra.mxu0 0.0
  %1835 = vmatprep.subr.mxu0 0.0
  %1836 = vmatpush1.msra.mxu0 0.0
  %1837 = vmatprep.subr.mxu0 0.0
  %1838 = vmatpush1.msra.mxu0 0.0
  %1839 = vmatprep.subr.mxu0 0.0
  %1840 = vmatpush1.msra.mxu0 0.0
  %1841 = vmatprep.subr.mxu0 0.0
  %1842 = vmatpush1.msra.mxu0 0.0
  %1843 = vmatprep.subr.mxu0 0.0
  %1844 = vmatpush1.msra.mxu0 0.0
  %1845 = vmatprep.subr.mxu0 0.0
  %1846 = vmatpush1.msra.mxu0 0.0
  %1847 = vmatprep.subr.mxu0 0.0
  %1848 = vmatpush1.msra.mxu0 0.0
  %1849 = vmatprep.subr.mxu0 0.0
  %1850 = vmatpush1.msra.mxu0 0.0
  %1851 = vmatprep.subr.mxu0 0.0
  %1852 = vmatpush1.msra.mxu0 0.0
  %1853 = vmatprep.subr.mxu0 0.0
  %1854 = vmatpush1.msra.mxu0 0.0
  %1855 = vmatprep.mubr.f32.mxu0 0.0
  %1856 = vmatmul.mubr.f32.gmra.mrb[0].mxu0 %v1576
  %v1857 = vpop.f32.mrb[0].mxu0
  %v1858 = vadd.f32 0.0, %v1857
  %v1859 = vpop.f32.mrb[0].mxu0
  %v1860 = vadd.f32 0.0, %v1859
  %1861 = vdwg.mxu0
  %v1862 = vld [vmem:[%s8] sm:$0xff]
  %v1863 = vld [vmem:[%s5] sm:$0xff]
  %v1864 = vld [vmem:[%s6] sm:$0xff]
  %v1866 = vlaneseq
  %v1867 = vshrl.u32 %v1866, 7
  %v1868 = vsub.s32 0, %v1867
  %v1869 = vrot.slane %v1862, %v1868
  %v1870 = vlaneseq
  %v1871 = vshrl.u32 %v1870, 7
  %v1872 = vsub.s32 1, %v1871
  %v1873 = vrot.slane %v1862, %v1872
  %v1874 = vlaneseq
  %v1875 = vshrl.u32 %v1874, 7
  %v1876 = vsub.s32 2, %v1875
  %v1877 = vrot.slane %v1862, %v1876
  %v1878 = vlaneseq
  %v1879 = vshrl.u32 %v1878, 7
  %v1880 = vsub.s32 3, %v1879
  %v1881 = vrot.slane %v1862, %v1880
  %v1882 = vlaneseq
  %v1883 = vshrl.u32 %v1882, 7
  %v1884 = vsub.s32 4, %v1883
  %v1885 = vrot.slane %v1862, %v1884
  %v1886 = vlaneseq
  %v1887 = vshrl.u32 %v1886, 7
  %v1888 = vsub.s32 5, %v1887
  %v1889 = vrot.slane %v1862, %v1888
  %v1890 = vlaneseq
  %v1891 = vshrl.u32 %v1890, 7
  %v1892 = vsub.s32 6, %v1891
  %v1893 = vrot.slane %v1862, %v1892
  %v1894 = vlaneseq
  %v1895 = vshrl.u32 %v1894, 7
  %v1896 = vsub.s32 7, %v1895
  %v1897 = vrot.slane %v1862, %v1896
  %v1906 = vmul.f32 %v1645, %v1869
  %v1907 = vmul.f32 %v1647, %v1873
  %v1908 = vmul.f32 %v1716, %v1877
  %v1909 = vmul.f32 %v1718, %v1881
  %v1910 = vmul.f32 %v1787, %v1885
  %v1911 = vmul.f32 %v1789, %v1889
  %v1912 = vmul.f32 %v1858, %v1893
  %v1913 = vmul.f32 %v1860, %v1897
  %v1914 = vadd.f32 %v1906, %v1907
  %v1915 = vadd.f32 %v1914, %v1908
  %v1916 = vadd.f32 %v1915, %v1909
  %v1917 = vadd.f32 %v1916, %v1910
  %v1918 = vadd.f32 %v1917, %v1911
  %v1919 = vadd.f32 %v1918, %v1912
  %v1920 = vsel %vm600, %v1913, 0.0
  %v1921 = vadd.f32 %v1919, %v1920
  %1922 = vadd.xlane.f32.xlu0 %v1921
  %v1923 = vpop.xlane.xlu0 %1922
  %v1924 = vmul.f32 %v1923, 0.00125
  %v1925 = vsub.f32 %v1645, %v1924
  %v1926 = vsub.f32 %v1647, %v1924
  %v1927 = vsub.f32 %v1716, %v1924
  %v1928 = vsub.f32 %v1718, %v1924
  %v1929 = vsub.f32 %v1787, %v1924
  %v1930 = vsub.f32 %v1789, %v1924
  %v1931 = vsub.f32 %v1858, %v1924
  %v1932 = vsub.f32 %v1860, %v1924
  %v1933 = vmul.f32 %v1925, %v1869
  %v1934 = vmul.f32 %v1926, %v1873
  %v1935 = vmul.f32 %v1927, %v1877
  %v1936 = vmul.f32 %v1928, %v1881
  %v1937 = vmul.f32 %v1929, %v1885
  %v1938 = vmul.f32 %v1930, %v1889
  %v1939 = vmul.f32 %v1931, %v1893
  %v1940 = vmul.f32 %v1932, %v1897
  %v1941 = vmul.f32 %v1933, %v1933
  %v1942 = vmul.f32 %v1934, %v1934
  %v1943 = vmul.f32 %v1935, %v1935
  %v1944 = vmul.f32 %v1936, %v1936
  %v1945 = vmul.f32 %v1937, %v1937
  %v1946 = vmul.f32 %v1938, %v1938
  %v1947 = vmul.f32 %v1939, %v1939
  %v1948 = vmul.f32 %v1940, %v1940
  %v1949 = vadd.f32 %v1941, %v1942
  %v1950 = vadd.f32 %v1949, %v1943
  %v1951 = vadd.f32 %v1950, %v1944
  %v1952 = vadd.f32 %v1951, %v1945
  %v1953 = vadd.f32 %v1952, %v1946
  %v1954 = vadd.f32 %v1953, %v1947
  %v1955 = vsel %vm600, %v1948, 0.0
  %v1956 = vadd.f32 %v1954, %v1955
  %1957 = vadd.xlane.f32.xlu0 %v1956
  %v1958 = vpop.xlane.xlu0 %1957
  %v1959 = vmul.f32 %v1958, 0.00125
  %v1960 = vadd.f32 %v1959, 1e-05
  %v1961 = vrsqrt.pop %v1960
  %v1962 = vmul.f32 %v1933, %v1961
  %v1963 = vmul.f32 %v1934, %v1961
  %v1964 = vmul.f32 %v1935, %v1961
  %v1965 = vmul.f32 %v1936, %v1961
  %v1966 = vmul.f32 %v1937, %v1961
  %v1967 = vmul.f32 %v1938, %v1961
  %v1968 = vmul.f32 %v1939, %v1961
  %v1969 = vmul.f32 %v1940, %v1961
  %1971 = vset.pattern.permute.xlu0 0
  %1972 = vperm.xlu0 %1971, %v1863
  %v1973 = vpop.permute.xlu0 %1972
  %v1975 = vmul.f32 %v1962, %v1973
  %v1976 = vmul.f32 %v1963, %v1973
  %v1977 = vmul.f32 %v1964, %v1973
  %v1978 = vmul.f32 %v1965, %v1973
  %v1979 = vmul.f32 %v1966, %v1973
  %v1980 = vmul.f32 %v1967, %v1973
  %v1981 = vmul.f32 %v1968, %v1973
  %v1982 = vmul.f32 %v1969, %v1973
  %1984 = vset.pattern.permute.xlu0 0
  %1985 = vperm.xlu0 %1984, %v1864
  %v1986 = vpop.permute.xlu0 %1985
  %v1988 = vadd.f32 %v1975, %v1986
  %v1989 = vadd.f32 %v1976, %v1986
  %v1990 = vadd.f32 %v1977, %v1986
  %v1991 = vadd.f32 %v1978, %v1986
  %v1992 = vadd.f32 %v1979, %v1986
  %v1993 = vadd.f32 %v1980, %v1986
  %v1994 = vadd.f32 %v1981, %v1986
  %v1995 = vadd.f32 %v1982, %v1986
  %v1996 = vmax.f32 %v1988, 0.0
  %v1997 = vmax.f32 %v1989, 0.0
  %v1998 = vmax.f32 %v1990, 0.0
  %v1999 = vmax.f32 %v1991, 0.0
  %v2000 = vmax.f32 %v1992, 0.0
  %v2001 = vmax.f32 %v1993, 0.0
  %v2002 = vmax.f32 %v1994, 0.0
  %v2003 = vmax.f32 %v1995, 0.0
  %v2004 = vmul.f32 %v1996, %v1869
  %v2005 = vmul.f32 %v1997, %v1873
  %v2006 = vmul.f32 %v1998, %v1877
  %v2007 = vmul.f32 %v1999, %v1881
  %v2008 = vmul.f32 %v2000, %v1885
  %v2009 = vmul.f32 %v2001, %v1889
  %v2010 = vmul.f32 %v2002, %v1893
  %v2011 = vmul.f32 %v2003, %v1897
  %2012 = vst [vmem:[%s9] sm:$0xff] %v2004
  %2013 = vst [vmem:[%s9 + $0x8] sm:$0xff] %v2005
  %2014 = vst [vmem:[%s9 + $0x10] sm:$0xff] %v2006
  %2015 = vst [vmem:[%s9 + $0x18] sm:$0xff] %v2007
  %2016 = vst [vmem:[%s9 + $0x20] sm:$0xff] %v2008
  %2017 = vst [vmem:[%s9 + $0x28] sm:$0xff] %v2009
  %2018 = vst [vmem:[%s9 + $0x30] sm:$0xff] %v2010
  %2019 = vst.msk [vmem:[%s9 + $0x38] sm:$0xff] %vm600, %v2011
  // Predicated region
  $region38: #{unet2d_block.1} parent=0 // pred_check
    _
  $region39: #{unet2d_block.1} parent=0 // pred_check_branch
    %2021 = sbr.rel (0) target = $region41
  $region40: #{unet2d_block.1} parent=0 // pred_region
    _
  $region41: #{unet2d_block.1} parent=0 // pred_fallthru
    _
  // Predicated region
  $region42: #{unet2d_block.1} parent=0 // pred_check
    _
  $region43: #{unet2d_block.1} parent=0 // pred_check_branch
    %2023 = sbr.rel (0) target = $region45
  $region44: #{unet2d_block.1} parent=0 // pred_region
    _
  $region45: #{unet2d_block.1} parent=0 // pred_fallthru
    _

</llo_original>
